<compile_context>
chip_gen: v6e
topology: v6e:2x2x1
jax: 0.10.0
libtpu: 0.0.40
codegen_flags: <defaults>
</compile_context>

<pallas_src>
import jax
import jax.numpy as jnp
import numpy as np
from jax import lax
from jax.experimental import pallas as pl
from jax.experimental.pallas import tpu as pltpu

_BN_EPS = 1e-5  # BatchNorm2d default eps


# ---------------------------------------------------------------------------
# Stage 1: the three 1x1-conv projections (bf16 MXU matmuls, no bias) plus
# in-kernel BN partial sums (sum, sum-of-squares over N) per batch.
# ---------------------------------------------------------------------------
def _proj_kernel(x1_ref, x2_ref, x3_ref, wq_ref, wk_ref, wv_ref,
                 q_ref, k_ref, v_ref, qs_ref, ks_ref, vs_ref):
    f32, bf16 = jnp.float32, jnp.bfloat16

    def proj(w_ref, x_ref, y_ref, s_ref):
        # (O, C) bf16  x  (C, N) bf16  ->  (O, N) f32 accumulation.
        y = jnp.dot(w_ref[...], x_ref[0].astype(bf16),
                    preferred_element_type=f32)
        y_ref[0] = y.astype(bf16)
        # BN partial sums over the points axis, from the f32 accumulator.
        s_ref[0, :, 0:1] = jnp.sum(y, axis=-1, keepdims=True)
        s_ref[0, :, 1:2] = jnp.sum(y * y, axis=-1, keepdims=True)

    proj(wq_ref, x1_ref, q_ref, qs_ref)
    proj(wk_ref, x2_ref, k_ref, ks_ref)
    proj(wv_ref, x3_ref, v_ref, vs_ref)


# ---------------------------------------------------------------------------
# Stage 2: fused BN+ReLU on q/k/v, re-oriented attention with deferred softmax
# normalization, final 1x1 conv, and in-kernel BN partial sums of its output.
# ---------------------------------------------------------------------------
def _attn_kernel(q_ref, k_ref, v_ref,
                 sq_ref, tq_ref, sk_ref, tk_ref, sv_ref, tv_ref,
                 wc_ref, co_ref, cs_ref):
    f32, bf16 = jnp.float32, jnp.bfloat16

    def bn_relu(y_ref, s_ref, t_ref):
        # Pre-folded BatchNorm (scale/shift) + ReLU in f32, then bf16 for MXU.
        return jnp.maximum(y_ref[0].astype(f32) * s_ref[...] + t_ref[...],
                           0.0).astype(bf16)

    q = bn_relu(q_ref, sq_ref, tq_ref)    # (Cq, TQ)
    k = bn_relu(k_ref, sk_ref, tk_ref)    # (Cq, N)
    v = bn_relu(v_ref, sv_ref, tv_ref)    # (C,  N)

    # scores^T[j, i] = sum_c k[c, j] * q[c, i]  (torch's scores, transposed)
    sT = lax.dot_general(k, q, (((0,), (0,)), ((), ())),
                         preferred_element_type=f32)        # (N, TQ)

    # softmax over torch dim=2 == axis 0 of sT; normalization is deferred.
    m = jnp.max(sT, axis=0, keepdims=True)                  # (1, TQ)
    e = jnp.exp(sT - m)                                     # (N, TQ)
    l = jnp.sum(e, axis=0, keepdims=True)                   # (1, TQ)

    # out[c, i] = (sum_j v[c, j] * e[j, i]) / l[i]  == (v1 @ att^T)[c, i]
    out = jnp.dot(v, e.astype(bf16), preferred_element_type=f32)  # (C, TQ)
    out = out * pl.reciprocal(l, approx=True)

    # Final 1x1 conv (bf16 operands, f32 accumulation).
    co = jnp.dot(wc_ref[...], out.astype(bf16),
                 preferred_element_type=f32)                # (C, TQ)
    co_ref[0] = co.astype(bf16)
    cs_ref[0, 0, :, 0:1] = jnp.sum(co, axis=-1, keepdims=True)
    cs_ref[0, 0, :, 1:2] = jnp.sum(co * co, axis=-1, keepdims=True)


# ---------------------------------------------------------------------------
# Stage 3: fused BN+ReLU + gamma-scaled residual (aliased onto the n3 buffer).
# ---------------------------------------------------------------------------
def _final_kernel(x3_ref, co_ref, s4_ref, t4_ref, gamma_ref, out_ref):
    y = jnp.maximum(co_ref[0].astype(jnp.float32) * s4_ref[...] + t4_ref[...],
                    0.0)
    out_ref[0] = x3_ref[0] + gamma_ref[0, 0] * y


# ---------------------------------------------------------------------------
# BN fold: reduce the tiny in-kernel partial sums into per-channel scale/shift
# (training-mode stats over (B, N), biased variance, one-pass with clamp).
# ---------------------------------------------------------------------------
def _fold_bn(stats, g, be, count, eps=_BN_EPS):
    # stats: (..., Cc, 2) with [..., 0] = sum over N, [..., 1] = sum of squares
    cc = stats.shape[-2]
    tot = jnp.sum(stats.reshape(-1, cc, 2), axis=0)          # (Cc, 2)
    mean = tot[:, 0] / count
    var = jnp.maximum(tot[:, 1] / count - mean * mean, 0.0)  # biased variance
    scale = g * lax.rsqrt(var + eps)
    shift = be - mean * scale
    return scale[:, None], shift[:, None]                    # (Cc, 1) each


# ---------------------------------------------------------------------------
# Wrapper
# ---------------------------------------------------------------------------
@jax.jit
def cci_layer_forward(n1, n2, n3, params):
    """n1, n2, n3: (B, C, N, 1) float32 NCHW.  Returns (B, C, N, 1)."""
    B, C, N, W = n1.shape
    assert W == 1 and C % 4 == 0
    assert N % 128 == 0, "pad N to a multiple of 128 for lane-dense stores"
    Cq = C // 4

    # Query tiling for Stage 2: bounds the (N, TQ) scores/e temporaries
    # (v7x VMEM) and adds a second "parallel" grid axis for its 2 TensorCores.
    if N <= 512:
        tile_q = N
    else:
        tile_q = max(t for t in (128, 256, 384, 512) if N % t == 0)
    nq = N // tile_q

    f32, bf16 = jnp.float32, jnp.bfloat16
    x1 = n1[..., 0].astype(f32)
    x2 = n2[..., 0].astype(f32)
    x3 = n3[..., 0].astype(f32)

    # Conv biases (bq/bk/bv/bc) are intentionally never used: each conv is
    # immediately followed by training-mode BatchNorm, which cancels a
    # per-channel additive bias exactly.
    wq = params["wq"].astype(bf16)
    wk = params["wk"].astype(bf16)
    wv = params["wv"].astype(bf16)
    wc = params["wc"].astype(bf16)

    parallel1 = pltpu.CompilerParams(dimension_semantics=("parallel",))

    def bspec(c, n):                      # per-batch (1, c, n) block
        return pl.BlockSpec((1, c, n), lambda b: (b, 0, 0))

    def cspec(shape):                     # grid-invariant constant block
        return pl.BlockSpec(shape, lambda b: (0,) * len(shape))

    # ---- Stage 1: 1x1 conv projections + BN partial sums ---------------------
    q_raw, k_raw, v_raw, qs, ks, vs = pl.pallas_call(
        _proj_kernel,
        grid=(B,),
        in_specs=[bspec(C, N)] * 3 + [
            cspec((Cq, C)), cspec((Cq, C)), cspec((C, C))],
        out_specs=[bspec(Cq, N), bspec(Cq, N), bspec(C, N),
                   bspec(Cq, 2), bspec(Cq, 2), bspec(C, 2)],
        out_shape=[
            jax.ShapeDtypeStruct((B, Cq, N), bf16),
            jax.ShapeDtypeStruct((B, Cq, N), bf16),
            jax.ShapeDtypeStruct((B, C, N), bf16),
            jax.ShapeDtypeStruct((B, Cq, 2), f32),
            jax.ShapeDtypeStruct((B, Cq, 2), f32),
            jax.ShapeDtypeStruct((B, C, 2), f32),
        ],
        compiler_params=parallel1,
    )(x1, x2, x3, wq, wk, wv)

    # ---- Fold BN stats (tiny (B, C, 2) arrays only; no big XLA reductions) ---
    count = float(B * N)
    sq, tq = _fold_bn(qs, params["gq"], params["beq"], count)
    sk, tk = _fold_bn(ks, params["gk"], params["bek"], count)
    sv, tv = _fold_bn(vs, params["gv"], params["bev"], count)

    # ---- Stage 2: BN+ReLU, attention, final 1x1 conv + BN partial sums -------
    def qspec(c):                         # query-tiled (1, c, tile_q) block
        return pl.BlockSpec((1, c, tile_q), lambda b, i: (b, 0, i))

    def kvspec(c):                        # full-N per-batch block
        return pl.BlockSpec((1, c, N), lambda b, i: (b, 0, 0))

    def cspec2(shape):
        return pl.BlockSpec(shape, lambda b, i: (0,) * len(shape))

    co, cs = pl.pallas_call(
        _attn_kernel,
        grid=(B, nq),
        in_specs=[qspec(Cq), kvspec(Cq), kvspec(C),
                  cspec2((Cq, 1)), cspec2((Cq, 1)),
                  cspec2((Cq, 1)), cspec2((Cq, 1)),
                  cspec2((C, 1)), cspec2((C, 1)),
                  cspec2((C, C))],
        out_specs=[qspec(C),
                   pl.BlockSpec((1, 1, C, 2), lambda b, i: (b, i, 0, 0))],
        out_shape=[jax.ShapeDtypeStruct((B, C, N), bf16),
                   jax.ShapeDtypeStruct((B, nq, C, 2), f32)],
        compiler_params=pltpu.CompilerParams(
            dimension_semantics=("parallel", "parallel")),
    )(q_raw, k_raw, v_raw, sq, tq, sk, tk, sv, tv, wc)

    s4, t4 = _fold_bn(cs, params["gc"], params["bec"], count)

    # ---- Stage 3: BN+ReLU + gamma residual (output aliases the n3 buffer) ----
    gamma = params["gamma"].reshape(1, 1).astype(f32)
    out = pl.pallas_call(
        _final_kernel,
        grid=(B,),
        in_specs=[bspec(C, N), bspec(C, N), cspec((C, 1)), cspec((C, 1)),
                  pl.BlockSpec(memory_space=pltpu.MemorySpace.SMEM)],
        out_specs=bspec(C, N),
        out_shape=jax.ShapeDtypeStruct((B, C, N), f32),
        input_output_aliases={0: 0},
        compiler_params=parallel1,
    )(x3, co, s4, t4, gamma)

    return out[..., None]


# ---------------------------------------------------------------------------
# Parameters & pure-JAX reference
# ---------------------------------------------------------------------------
def init_params(key, in_channel):
    """Deterministic synthetic parameters (shapes follow the nn.Module)."""
    C = in_channel
    Cq = C // 4
    ks = jax.random.split(key, 8)

    def conv_w(k, o, i):
        bound = 1.0 / np.sqrt(i)
        return jax.random.uniform(k, (o, i), jnp.float32, -bound, bound)

    def conv_b(k, o, i):
        bound = 1.0 / np.sqrt(i)
        return jax.random.uniform(k, (o,), jnp.float32, -bound, bound)

    return {
        "wq": conv_w(ks[0], Cq, C), "bq": conv_b(ks[1], Cq, C),
        "gq": jnp.ones((Cq,), jnp.float32), "beq": jnp.zeros((Cq,), jnp.float32),
        "wk": conv_w(ks[2], Cq, C), "bk": conv_b(ks[3], Cq, C),
        "gk": jnp.ones((Cq,), jnp.float32), "bek": jnp.zeros((Cq,), jnp.float32),
        "wv": conv_w(ks[4], C, C), "bv": conv_b(ks[5], C, C),
        "gv": jnp.ones((C,), jnp.float32), "bev": jnp.zeros((C,), jnp.float32),
        "wc": conv_w(ks[6], C, C), "bc": conv_b(ks[7], C, C),
        "gc": jnp.ones((C,), jnp.float32), "bec": jnp.zeros((C,), jnp.float32),
        # Module initializes gamma = zeros(1); use a non-zero value here so the
        # correctness check actually exercises the whole attention path.
        "gamma": jnp.full((1,), 0.75, jnp.float32),
    }


def cci_layer_reference(n1, n2, n3, p):
    """Pure-JAX f32 reference mirroring the torch ops (with conv biases)."""
    eps = _BN_EPS

    def conv_bn_relu(x, w, b, g, be):
        y = jnp.einsum("oc,bcn->bon", w, x[..., 0]) + b[None, :, None]
        mu = jnp.mean(y, axis=(0, 2), keepdims=True)
        var = jnp.mean((y - mu) ** 2, axis=(0, 2), keepdims=True)
        y = (y - mu) * lax.rsqrt(var + eps) * g[None, :, None] + be[None, :, None]
        return jnp.maximum(y, 0.0)

    q1 = conv_bn_relu(n1, p["wq"], p["bq"], p["gq"], p["beq"])
    k1 = conv_bn_relu(n2, p["wk"], p["bk"], p["gk"], p["bek"])
    v1 = conv_bn_relu(n3, p["wv"], p["bv"], p["gv"], p["bev"])

    scores = jnp.einsum("bci,bcj->bij", q1, k1)
    att = jax.nn.softmax(scores, axis=2)
    out = jnp.einsum("bcj,bij->bci", v1, att)

    co = conv_bn_relu(out[..., None], p["wc"], p["bc"], p["gc"], p["bec"])
    return n3 + p["gamma"][0] * co[..., None]


if __name__ == "__main__":
    B, C, N = 2, 32, 128          # batch, in_channel, points (W = 1); C//4 = 8
    key = jax.random.PRNGKey(0)
    k1, k2, k3, kp = jax.random.split(key, 4)

    n1 = jax.random.normal(k1, (B, C, N, 1), jnp.float32)
    n2 = jax.random.normal(k2, (B, C, N, 1), jnp.float32)
    n3 = jax.random.normal(k3, (B, C, N, 1), jnp.float32)
    params = init_params(kp, C)

    out = jax.block_until_ready(cci_layer_forward(n1, n2, n3, params))
    ref = jax.block_until_ready(cci_layer_reference(n1, n2, n3, params))

    assert out.shape == (B, C, N, 1)
    # Tolerance accounts for bf16 MXU operands and bf16-stored intermediates;
    # all normalization / softmax-reduction math stays f32.
    np.testing.assert_allclose(np.asarray(out), np.asarray(ref),
                               rtol=5e-2, atol=6e-2)
    print("KERNEL_OK")
</pallas_src>

<mosaic_0001>
module attributes {stable_mosaic.version = 11 : i64} {
  func.func @_proj_kernel(%arg0: i32, %arg1: memref<1x32x128xf32, #tpu.memory_space<vmem>>, %arg2: memref<1x32x128xf32, #tpu.memory_space<vmem>>, %arg3: memref<1x32x128xf32, #tpu.memory_space<vmem>>, %arg4: memref<8x32xbf16, #tpu.memory_space<vmem>>, %arg5: memref<8x32xbf16, #tpu.memory_space<vmem>>, %arg6: memref<32x32xbf16, #tpu.memory_space<vmem>>, %arg7: memref<1x8x128xbf16, #tpu.memory_space<vmem>>, %arg8: memref<1x8x128xbf16, #tpu.memory_space<vmem>>, %arg9: memref<1x32x128xbf16, #tpu.memory_space<vmem>>, %arg10: memref<1x8x2xf32, #tpu.memory_space<vmem>>, %arg11: memref<1x8x2xf32, #tpu.memory_space<vmem>>, %arg12: memref<1x32x2xf32, #tpu.memory_space<vmem>>) attributes {dimension_semantics = [#tpu.dimension_semantics<parallel>], iteration_bounds = array<i64: 2>, scalar_prefetch = 0 : i64, scratch_operands = 0 : i64, tpu.core_type = #tpu.core_type<tc>, window_params = [{transform_indices = @transform_0, window_bounds = array<i64: 1, 32, 128>}, {transform_indices = @transform_1, window_bounds = array<i64: 1, 32, 128>}, {transform_indices = @transform_2, window_bounds = array<i64: 1, 32, 128>}, {pipeline_mode = #tpu.pipeline_mode<synchronous>, transform_indices = @transform_3, window_bounds = array<i64: 8, 32>}, {pipeline_mode = #tpu.pipeline_mode<synchronous>, transform_indices = @transform_4, window_bounds = array<i64: 8, 32>}, {pipeline_mode = #tpu.pipeline_mode<synchronous>, transform_indices = @transform_5, window_bounds = array<i64: 32, 32>}, {transform_indices = @transform_6, window_bounds = array<i64: 1, 8, 128>}, {transform_indices = @transform_7, window_bounds = array<i64: 1, 8, 128>}, {transform_indices = @transform_8, window_bounds = array<i64: 1, 32, 128>}, {transform_indices = @transform_9, window_bounds = array<i64: 1, 8, 2>}, {transform_indices = @transform_10, window_bounds = array<i64: 1, 8, 2>}, {transform_indices = @transform_11, window_bounds = array<i64: 1, 32, 2>}]} {
    %c0 = arith.constant 0 : index
    %c0_0 = arith.constant 0 : index
    %0 = vector.load %arg4[%c0, %c0_0] : memref<8x32xbf16, #tpu.memory_space<vmem>>, vector<8x32xbf16>
    %c0_1 = arith.constant 0 : index
    %c0_2 = arith.constant 0 : index
    %c0_3 = arith.constant 0 : index
    %1 = vector.load %arg1[%c0_1, %c0_2, %c0_3] : memref<1x32x128xf32, #tpu.memory_space<vmem>>, vector<1x32x128xf32>
    %2 = vector.shape_cast %1 : vector<1x32x128xf32> to vector<32x128xf32>
    %3 = arith.truncf %2 : vector<32x128xf32> to vector<32x128xbf16>
    %cst = arith.constant dense<0.000000e+00> : vector<8x128xf32>
    %4 = tpu.matmul %0, %3, %cst {dimension_numbers = #tpu.dot_dimension_numbers<[1], [0], [0], [1], [0, 0, 1, 1], [], []>} : vector<8x32xbf16>, vector<32x128xbf16>, vector<8x128xf32> -> vector<8x128xf32>
    %5 = arith.truncf %4 : vector<8x128xf32> to vector<8x128xbf16>
    %c0_4 = arith.constant 0 : index
    %c0_5 = arith.constant 0 : index
    %c0_6 = arith.constant 0 : index
    %6 = vector.load %arg7[%c0_4, %c0_5, %c0_6] : memref<1x8x128xbf16, #tpu.memory_space<vmem>>, vector<1x8x128xbf16>
    %7 = vector.shape_cast %6 : vector<1x8x128xbf16> to vector<8x128xbf16>
    %8 = vector.shape_cast %5 : vector<8x128xbf16> to vector<1x8x128xbf16>
    tpu.vector_store %arg7[%c0_4, %c0_5, %c0_6], %8 {strides = array<i32>} : memref<1x8x128xbf16, #tpu.memory_space<vmem>>, vector<1x8x128xbf16>,
    %cst_7 = arith.constant dense<0.000000e+00> : vector<8xf32>
    %9 = vector.multi_reduction <add>, %4, %cst_7 [1] : vector<8x128xf32> to vector<8xf32>
    %10 = vector.shape_cast %9 : vector<8xf32> to vector<8x1xf32>
    %c0_8 = arith.constant 0 : index
    %c0_9 = arith.constant 0 : index
    %c0_10 = arith.constant 0 : index
    %11 = vector.load %arg10[%c0_8, %c0_9, %c0_10] : memref<1x8x2xf32, #tpu.memory_space<vmem>>, vector<1x8x1xf32>
    %12 = vector.shape_cast %11 : vector<1x8x1xf32> to vector<8x1xf32>
    %13 = vector.shape_cast %10 : vector<8x1xf32> to vector<1x8x1xf32>
    tpu.vector_store %arg10[%c0_8, %c0_9, %c0_10], %13 {strides = array<i32>} : memref<1x8x2xf32, #tpu.memory_space<vmem>>, vector<1x8x1xf32>,
    %14 = arith.mulf %4, %4 : vector<8x128xf32>
    %cst_11 = arith.constant dense<0.000000e+00> : vector<8xf32>
    %15 = vector.multi_reduction <add>, %14, %cst_11 [1] : vector<8x128xf32> to vector<8xf32>
    %16 = vector.shape_cast %15 : vector<8xf32> to vector<8x1xf32>
    %c0_12 = arith.constant 0 : index
    %c0_13 = arith.constant 0 : index
    %c1 = arith.constant 1 : index
    %17 = vector.load %arg10[%c0_12, %c0_13, %c1] : memref<1x8x2xf32, #tpu.memory_space<vmem>>, vector<1x8x1xf32>
    %18 = vector.shape_cast %17 : vector<1x8x1xf32> to vector<8x1xf32>
    %19 = vector.shape_cast %16 : vector<8x1xf32> to vector<1x8x1xf32>
    tpu.vector_store %arg10[%c0_12, %c0_13, %c1], %19 {strides = array<i32>} : memref<1x8x2xf32, #tpu.memory_space<vmem>>, vector<1x8x1xf32>,
    %c0_14 = arith.constant 0 : index
    %c0_15 = arith.constant 0 : index
    %20 = vector.load %arg5[%c0_14, %c0_15] : memref<8x32xbf16, #tpu.memory_space<vmem>>, vector<8x32xbf16>
    %c0_16 = arith.constant 0 : index
    %c0_17 = arith.constant 0 : index
    %c0_18 = arith.constant 0 : index
    %21 = vector.load %arg2[%c0_16, %c0_17, %c0_18] : memref<1x32x128xf32, #tpu.memory_space<vmem>>, vector<1x32x128xf32>
    %22 = vector.shape_cast %21 : vector<1x32x128xf32> to vector<32x128xf32>
    %23 = arith.truncf %22 : vector<32x128xf32> to vector<32x128xbf16>
    %cst_19 = arith.constant dense<0.000000e+00> : vector<8x128xf32>
    %24 = tpu.matmul %20, %23, %cst_19 {dimension_numbers = #tpu.dot_dimension_numbers<[1], [0], [0], [1], [0, 0, 1, 1], [], []>} : vector<8x32xbf16>, vector<32x128xbf16>, vector<8x128xf32> -> vector<8x128xf32>
    %25 = arith.truncf %24 : vector<8x128xf32> to vector<8x128xbf16>
    %c0_20 = arith.constant 0 : index
    %c0_21 = arith.constant 0 : index
    %c0_22 = arith.constant 0 : index
    %26 = vector.load %arg8[%c0_20, %c0_21, %c0_22] : memref<1x8x128xbf16, #tpu.memory_space<vmem>>, vector<1x8x128xbf16>
    %27 = vector.shape_cast %26 : vector<1x8x128xbf16> to vector<8x128xbf16>
    %28 = vector.shape_cast %25 : vector<8x128xbf16> to vector<1x8x128xbf16>
    tpu.vector_store %arg8[%c0_20, %c0_21, %c0_22], %28 {strides = array<i32>} : memref<1x8x128xbf16, #tpu.memory_space<vmem>>, vector<1x8x128xbf16>,
    %cst_23 = arith.constant dense<0.000000e+00> : vector<8xf32>
    %29 = vector.multi_reduction <add>, %24, %cst_23 [1] : vector<8x128xf32> to vector<8xf32>
    %30 = vector.shape_cast %29 : vector<8xf32> to vector<8x1xf32>
    %c0_24 = arith.constant 0 : index
    %c0_25 = arith.constant 0 : index
    %c0_26 = arith.constant 0 : index
    %31 = vector.load %arg11[%c0_24, %c0_25, %c0_26] : memref<1x8x2xf32, #tpu.memory_space<vmem>>, vector<1x8x1xf32>
    %32 = vector.shape_cast %31 : vector<1x8x1xf32> to vector<8x1xf32>
    %33 = vector.shape_cast %30 : vector<8x1xf32> to vector<1x8x1xf32>
    tpu.vector_store %arg11[%c0_24, %c0_25, %c0_26], %33 {strides = array<i32>} : memref<1x8x2xf32, #tpu.memory_space<vmem>>, vector<1x8x1xf32>,
    %34 = arith.mulf %24, %24 : vector<8x128xf32>
    %cst_27 = arith.constant dense<0.000000e+00> : vector<8xf32>
    %35 = vector.multi_reduction <add>, %34, %cst_27 [1] : vector<8x128xf32> to vector<8xf32>
    %36 = vector.shape_cast %35 : vector<8xf32> to vector<8x1xf32>
    %c0_28 = arith.constant 0 : index
    %c0_29 = arith.constant 0 : index
    %c1_30 = arith.constant 1 : index
    %37 = vector.load %arg11[%c0_28, %c0_29, %c1_30] : memref<1x8x2xf32, #tpu.memory_space<vmem>>, vector<1x8x1xf32>
    %38 = vector.shape_cast %37 : vector<1x8x1xf32> to vector<8x1xf32>
    %39 = vector.shape_cast %36 : vector<8x1xf32> to vector<1x8x1xf32>
    tpu.vector_store %arg11[%c0_28, %c0_29, %c1_30], %39 {strides = array<i32>} : memref<1x8x2xf32, #tpu.memory_space<vmem>>, vector<1x8x1xf32>,
    %c0_31 = arith.constant 0 : index
    %c0_32 = arith.constant 0 : index
    %40 = vector.load %arg6[%c0_31, %c0_32] : memref<32x32xbf16, #tpu.memory_space<vmem>>, vector<32x32xbf16>
    %c0_33 = arith.constant 0 : index
    %c0_34 = arith.constant 0 : index
    %c0_35 = arith.constant 0 : index
    %41 = vector.load %arg3[%c0_33, %c0_34, %c0_35] : memref<1x32x128xf32, #tpu.memory_space<vmem>>, vector<1x32x128xf32>
    %42 = vector.shape_cast %41 : vector<1x32x128xf32> to vector<32x128xf32>
    %43 = arith.truncf %42 : vector<32x128xf32> to vector<32x128xbf16>
    %cst_36 = arith.constant dense<0.000000e+00> : vector<32x128xf32>
    %44 = tpu.matmul %40, %43, %cst_36 {dimension_numbers = #tpu.dot_dimension_numbers<[1], [0], [0], [1], [0, 0, 1, 1], [], []>} : vector<32x32xbf16>, vector<32x128xbf16>, vector<32x128xf32> -> vector<32x128xf32>
    %45 = arith.truncf %44 : vector<32x128xf32> to vector<32x128xbf16>
    %c0_37 = arith.constant 0 : index
    %c0_38 = arith.constant 0 : index
    %c0_39 = arith.constant 0 : index
    %46 = vector.load %arg9[%c0_37, %c0_38, %c0_39] : memref<1x32x128xbf16, #tpu.memory_space<vmem>>, vector<1x32x128xbf16>
    %47 = vector.shape_cast %46 : vector<1x32x128xbf16> to vector<32x128xbf16>
    %48 = vector.shape_cast %45 : vector<32x128xbf16> to vector<1x32x128xbf16>
    tpu.vector_store %arg9[%c0_37, %c0_38, %c0_39], %48 {strides = array<i32>} : memref<1x32x128xbf16, #tpu.memory_space<vmem>>, vector<1x32x128xbf16>,
    %cst_40 = arith.constant dense<0.000000e+00> : vector<32xf32>
    %49 = vector.multi_reduction <add>, %44, %cst_40 [1] : vector<32x128xf32> to vector<32xf32>
    %50 = vector.shape_cast %49 : vector<32xf32> to vector<32x1xf32>
    %c0_41 = arith.constant 0 : index
    %c0_42 = arith.constant 0 : index
    %c0_43 = arith.constant 0 : index
    %51 = vector.load %arg12[%c0_41, %c0_42, %c0_43] : memref<1x32x2xf32, #tpu.memory_space<vmem>>, vector<1x32x1xf32>
    %52 = vector.shape_cast %51 : vector<1x32x1xf32> to vector<32x1xf32>
    %53 = vector.shape_cast %50 : vector<32x1xf32> to vector<1x32x1xf32>
    tpu.vector_store %arg12[%c0_41, %c0_42, %c0_43], %53 {strides = array<i32>} : memref<1x32x2xf32, #tpu.memory_space<vmem>>, vector<1x32x1xf32>,
    %54 = arith.mulf %44, %44 : vector<32x128xf32>
    %cst_44 = arith.constant dense<0.000000e+00> : vector<32xf32>
    %55 = vector.multi_reduction <add>, %54, %cst_44 [1] : vector<32x128xf32> to vector<32xf32>
    %56 = vector.shape_cast %55 : vector<32xf32> to vector<32x1xf32>
    %c0_45 = arith.constant 0 : index
    %c0_46 = arith.constant 0 : index
    %c1_47 = arith.constant 1 : index
    %57 = vector.load %arg12[%c0_45, %c0_46, %c1_47] : memref<1x32x2xf32, #tpu.memory_space<vmem>>, vector<1x32x1xf32>
    %58 = vector.shape_cast %57 : vector<1x32x1xf32> to vector<32x1xf32>
    %59 = vector.shape_cast %56 : vector<32x1xf32> to vector<1x32x1xf32>
    tpu.vector_store %arg12[%c0_45, %c0_46, %c1_47], %59 {strides = array<i32>} : memref<1x32x2xf32, #tpu.memory_space<vmem>>, vector<1x32x1xf32>,
    return
  }
  func.func @transform_0(%arg0: i32) -> (i32, i32, i32) {
    %c0_i32 = arith.constant 0 : i32
    %c0_i32_0 = arith.constant 0 : i32
    %c0_i32_1 = arith.constant 0 : i32
    return %arg0, %c0_i32, %c0_i32_0 : i32, i32, i32
  }
  func.func @transform_1(%arg0: i32) -> (i32, i32, i32) {
    %c0_i32 = arith.constant 0 : i32
    %c0_i32_0 = arith.constant 0 : i32
    %c0_i32_1 = arith.constant 0 : i32
    return %arg0, %c0_i32, %c0_i32_0 : i32, i32, i32
  }
  func.func @transform_2(%arg0: i32) -> (i32, i32, i32) {
    %c0_i32 = arith.constant 0 : i32
    %c0_i32_0 = arith.constant 0 : i32
    %c0_i32_1 = arith.constant 0 : i32
    return %arg0, %c0_i32, %c0_i32_0 : i32, i32, i32
  }
  func.func @transform_3(%arg0: i32) -> (i32, i32) {
    %c0_i32 = arith.constant 0 : i32
    %c0_i32_0 = arith.constant 0 : i32
    %c0_i32_1 = arith.constant 0 : i32
    return %c0_i32, %c0_i32_0 : i32, i32
  }
  func.func @transform_4(%arg0: i32) -> (i32, i32) {
    %c0_i32 = arith.constant 0 : i32
    %c0_i32_0 = arith.constant 0 : i32
    %c0_i32_1 = arith.constant 0 : i32
    return %c0_i32, %c0_i32_0 : i32, i32
  }
  func.func @transform_5(%arg0: i32) -> (i32, i32) {
    %c0_i32 = arith.constant 0 : i32
    %c0_i32_0 = arith.constant 0 : i32
    %c0_i32_1 = arith.constant 0 : i32
    return %c0_i32, %c0_i32_0 : i32, i32
  }
  func.func @transform_6(%arg0: i32) -> (i32, i32, i32) {
    %c0_i32 = arith.constant 0 : i32
    %c0_i32_0 = arith.constant 0 : i32
    %c0_i32_1 = arith.constant 0 : i32
    return %arg0, %c0_i32, %c0_i32_0 : i32, i32, i32
  }
  func.func @transform_7(%arg0: i32) -> (i32, i32, i32) {
    %c0_i32 = arith.constant 0 : i32
    %c0_i32_0 = arith.constant 0 : i32
    %c0_i32_1 = arith.constant 0 : i32
    return %arg0, %c0_i32, %c0_i32_0 : i32, i32, i32
  }
  func.func @transform_8(%arg0: i32) -> (i32, i32, i32) {
    %c0_i32 = arith.constant 0 : i32
    %c0_i32_0 = arith.constant 0 : i32
    %c0_i32_1 = arith.constant 0 : i32
    return %arg0, %c0_i32, %c0_i32_0 : i32, i32, i32
  }
  func.func @transform_9(%arg0: i32) -> (i32, i32, i32) {
    %c0_i32 = arith.constant 0 : i32
    %c0_i32_0 = arith.constant 0 : i32
    %c0_i32_1 = arith.constant 0 : i32
    return %arg0, %c0_i32, %c0_i32_0 : i32, i32, i32
  }
  func.func @transform_10(%arg0: i32) -> (i32, i32, i32) {
    %c0_i32 = arith.constant 0 : i32
    %c0_i32_0 = arith.constant 0 : i32
    %c0_i32_1 = arith.constant 0 : i32
    return %arg0, %c0_i32, %c0_i32_0 : i32, i32, i32
  }
  func.func @transform_11(%arg0: i32) -> (i32, i32, i32) {
    %c0_i32 = arith.constant 0 : i32
    %c0_i32_0 = arith.constant 0 : i32
    %c0_i32_1 = arith.constant 0 : i32
    return %arg0, %c0_i32, %c0_i32_0 : i32, i32, i32
  }
}

module attributes {stable_mosaic.version = 11 : i64} {
  func.func @_final_kernel(%arg0: i32, %arg1: memref<1x32x128xf32, #tpu.memory_space<vmem>>, %arg2: memref<1x32x128xbf16, #tpu.memory_space<vmem>>, %arg3: memref<32x1xf32, #tpu.memory_space<vmem>>, %arg4: memref<32x1xf32, #tpu.memory_space<vmem>>, %arg5: memref<1x1xf32, #tpu.memory_space<smem>>, %arg6: memref<1x32x128xf32, #tpu.memory_space<vmem>>) attributes {dimension_semantics = [#tpu.dimension_semantics<parallel>], iteration_bounds = array<i64: 2>, scalar_prefetch = 0 : i64, scratch_operands = 0 : i64, tpu.core_type = #tpu.core_type<tc>, window_params = [{transform_indices = @transform_0, window_bounds = array<i64: 1, 32, 128>}, {transform_indices = @transform_1, window_bounds = array<i64: 1, 32, 128>}, {pipeline_mode = #tpu.pipeline_mode<synchronous>, transform_indices = @transform_2, window_bounds = array<i64: 32, 1>}, {pipeline_mode = #tpu.pipeline_mode<synchronous>, transform_indices = @transform_3, window_bounds = array<i64: 32, 1>}, {transform_indices = @transform_4, window_bounds = array<i64: 1, 1>}, {transform_indices = @transform_5, window_bounds = array<i64: 1, 32, 128>}]} {
    %c0 = arith.constant 0 : index
    %c0_0 = arith.constant 0 : index
    %c0_1 = arith.constant 0 : index
    %0 = vector.load %arg2[%c0, %c0_0, %c0_1] : memref<1x32x128xbf16, #tpu.memory_space<vmem>>, vector<1x32x128xbf16>
    %1 = vector.shape_cast %0 : vector<1x32x128xbf16> to vector<32x128xbf16>
    %2 = arith.extf %1 : vector<32x128xbf16> to vector<32x128xf32>
    %c0_2 = arith.constant 0 : index
    %c0_3 = arith.constant 0 : index
    %3 = vector.load %arg3[%c0_2, %c0_3] : memref<32x1xf32, #tpu.memory_space<vmem>>, vector<32x1xf32>
    %4 = vector.broadcast %3 : vector<32x1xf32> to vector<32x128xf32>
    %5 = arith.mulf %2, %4 : vector<32x128xf32>
    %c0_4 = arith.constant 0 : index
    %c0_5 = arith.constant 0 : index
    %6 = vector.load %arg4[%c0_4, %c0_5] : memref<32x1xf32, #tpu.memory_space<vmem>>, vector<32x1xf32>
    %7 = vector.broadcast %6 : vector<32x1xf32> to vector<32x128xf32>
    %8 = arith.addf %5, %7 : vector<32x128xf32>
    %cst = arith.constant 0.000000e+00 : f32
    %9 = vector.broadcast %cst : f32 to vector<32x128xf32>
    %10 = arith.maximumf %8, %9 : vector<32x128xf32>
    %c0_6 = arith.constant 0 : index
    %c0_7 = arith.constant 0 : index
    %c0_8 = arith.constant 0 : index
    %11 = vector.load %arg1[%c0_6, %c0_7, %c0_8] : memref<1x32x128xf32, #tpu.memory_space<vmem>>, vector<1x32x128xf32>
    %12 = vector.shape_cast %11 : vector<1x32x128xf32> to vector<32x128xf32>
    %c0_9 = arith.constant 0 : index
    %c0_10 = arith.constant 0 : index
    %13 = memref.load %arg5[%c0_9, %c0_10] : memref<1x1xf32, #tpu.memory_space<smem>>
    %14 = vector.broadcast %13 : f32 to vector<32x128xf32>
    %15 = arith.mulf %14, %10 : vector<32x128xf32>
    %16 = arith.addf %12, %15 : vector<32x128xf32>
    %c0_11 = arith.constant 0 : index
    %c0_12 = arith.constant 0 : index
    %c0_13 = arith.constant 0 : index
    %17 = vector.load %arg6[%c0_11, %c0_12, %c0_13] : memref<1x32x128xf32, #tpu.memory_space<vmem>>, vector<1x32x128xf32>
    %18 = vector.shape_cast %17 : vector<1x32x128xf32> to vector<32x128xf32>
    %19 = vector.shape_cast %16 : vector<32x128xf32> to vector<1x32x128xf32>
    tpu.vector_store %arg6[%c0_11, %c0_12, %c0_13], %19 {strides = array<i32>} : memref<1x32x128xf32, #tpu.memory_space<vmem>>, vector<1x32x128xf32>,
    return
  }
  func.func @transform_0(%arg0: i32) -> (i32, i32, i32) {
    %c0_i32 = arith.constant 0 : i32
    %c0_i32_0 = arith.constant 0 : i32
    %c0_i32_1 = arith.constant 0 : i32
    return %arg0, %c0_i32, %c0_i32_0 : i32, i32, i32
  }
  func.func @transform_1(%arg0: i32) -> (i32, i32, i32) {
    %c0_i32 = arith.constant 0 : i32
    %c0_i32_0 = arith.constant 0 : i32
    %c0_i32_1 = arith.constant 0 : i32
    return %arg0, %c0_i32, %c0_i32_0 : i32, i32, i32
  }
  func.func @transform_2(%arg0: i32) -> (i32, i32) {
    %c0_i32 = arith.constant 0 : i32
    %c0_i32_0 = arith.constant 0 : i32
    %c0_i32_1 = arith.constant 0 : i32
    return %c0_i32, %c0_i32_0 : i32, i32
  }
  func.func @transform_3(%arg0: i32) -> (i32, i32) {
    %c0_i32 = arith.constant 0 : i32
    %c0_i32_0 = arith.constant 0 : i32
    %c0_i32_1 = arith.constant 0 : i32
    return %c0_i32, %c0_i32_0 : i32, i32
  }
  func.func @transform_4(%arg0: i32) -> (i32, i32) {
    %c0_i32 = arith.constant 0 : i32
    %c0_i32_0 = arith.constant 0 : i32
    %c0_i32_1 = arith.constant 0 : i32
    return %c0_i32, %c0_i32_0 : i32, i32
  }
  func.func @transform_5(%arg0: i32) -> (i32, i32, i32) {
    %c0_i32 = arith.constant 0 : i32
    %c0_i32_0 = arith.constant 0 : i32
    %c0_i32_1 = arith.constant 0 : i32
    return %arg0, %c0_i32, %c0_i32_0 : i32, i32, i32
  }
}

module attributes {stable_mosaic.version = 11 : i64} {
  func.func @_attn_kernel(%arg0: i32, %arg1: i32, %arg2: memref<1x8x128xbf16, #tpu.memory_space<vmem>>, %arg3: memref<1x8x128xbf16, #tpu.memory_space<vmem>>, %arg4: memref<1x32x128xbf16, #tpu.memory_space<vmem>>, %arg5: memref<8x1xf32, #tpu.memory_space<vmem>>, %arg6: memref<8x1xf32, #tpu.memory_space<vmem>>, %arg7: memref<8x1xf32, #tpu.memory_space<vmem>>, %arg8: memref<8x1xf32, #tpu.memory_space<vmem>>, %arg9: memref<32x1xf32, #tpu.memory_space<vmem>>, %arg10: memref<32x1xf32, #tpu.memory_space<vmem>>, %arg11: memref<32x32xbf16, #tpu.memory_space<vmem>>, %arg12: memref<1x32x128xbf16, #tpu.memory_space<vmem>>, %arg13: memref<1x1x32x2xf32, #tpu.memory_space<vmem>>) attributes {dimension_semantics = [#tpu.dimension_semantics<parallel>, #tpu.dimension_semantics<parallel>], iteration_bounds = array<i64: 2, 1>, scalar_prefetch = 0 : i64, scratch_operands = 0 : i64, tpu.core_type = #tpu.core_type<tc>, window_params = [{transform_indices = @transform_0, window_bounds = array<i64: 1, 8, 128>}, {transform_indices = @transform_1, window_bounds = array<i64: 1, 8, 128>}, {transform_indices = @transform_2, window_bounds = array<i64: 1, 32, 128>}, {pipeline_mode = #tpu.pipeline_mode<synchronous>, transform_indices = @transform_3, window_bounds = array<i64: 8, 1>}, {pipeline_mode = #tpu.pipeline_mode<synchronous>, transform_indices = @transform_4, window_bounds = array<i64: 8, 1>}, {pipeline_mode = #tpu.pipeline_mode<synchronous>, transform_indices = @transform_5, window_bounds = array<i64: 8, 1>}, {pipeline_mode = #tpu.pipeline_mode<synchronous>, transform_indices = @transform_6, window_bounds = array<i64: 8, 1>}, {pipeline_mode = #tpu.pipeline_mode<synchronous>, transform_indices = @transform_7, window_bounds = array<i64: 32, 1>}, {pipeline_mode = #tpu.pipeline_mode<synchronous>, transform_indices = @transform_8, window_bounds = array<i64: 32, 1>}, {pipeline_mode = #tpu.pipeline_mode<synchronous>, transform_indices = @transform_9, window_bounds = array<i64: 32, 32>}, {transform_indices = @transform_10, window_bounds = array<i64: 1, 32, 128>}, {transform_indices = @transform_11, window_bounds = array<i64: 1, 1, 32, 2>}]} {
    %c0 = arith.constant 0 : index
    %c0_0 = arith.constant 0 : index
    %c0_1 = arith.constant 0 : index
    %0 = vector.load %arg2[%c0, %c0_0, %c0_1] : memref<1x8x128xbf16, #tpu.memory_space<vmem>>, vector<1x8x128xbf16>
    %1 = vector.shape_cast %0 : vector<1x8x128xbf16> to vector<8x128xbf16>
    %2 = arith.extf %1 : vector<8x128xbf16> to vector<8x128xf32>
    %c0_2 = arith.constant 0 : index
    %c0_3 = arith.constant 0 : index
    %3 = vector.load %arg5[%c0_2, %c0_3] : memref<8x1xf32, #tpu.memory_space<vmem>>, vector<8x1xf32>
    %4 = vector.broadcast %3 : vector<8x1xf32> to vector<8x128xf32>
    %5 = arith.mulf %2, %4 : vector<8x128xf32>
    %c0_4 = arith.constant 0 : index
    %c0_5 = arith.constant 0 : index
    %6 = vector.load %arg6[%c0_4, %c0_5] : memref<8x1xf32, #tpu.memory_space<vmem>>, vector<8x1xf32>
    %7 = vector.broadcast %6 : vector<8x1xf32> to vector<8x128xf32>
    %8 = arith.addf %5, %7 : vector<8x128xf32>
    %cst = arith.constant 0.000000e+00 : f32
    %9 = vector.broadcast %cst : f32 to vector<8x128xf32>
    %10 = arith.maximumf %8, %9 : vector<8x128xf32>
    %11 = arith.truncf %10 : vector<8x128xf32> to vector<8x128xbf16>
    %c0_6 = arith.constant 0 : index
    %c0_7 = arith.constant 0 : index
    %c0_8 = arith.constant 0 : index
    %12 = vector.load %arg3[%c0_6, %c0_7, %c0_8] : memref<1x8x128xbf16, #tpu.memory_space<vmem>>, vector<1x8x128xbf16>
    %13 = vector.shape_cast %12 : vector<1x8x128xbf16> to vector<8x128xbf16>
    %14 = arith.extf %13 : vector<8x128xbf16> to vector<8x128xf32>
    %c0_9 = arith.constant 0 : index
    %c0_10 = arith.constant 0 : index
    %15 = vector.load %arg7[%c0_9, %c0_10] : memref<8x1xf32, #tpu.memory_space<vmem>>, vector<8x1xf32>
    %16 = vector.broadcast %15 : vector<8x1xf32> to vector<8x128xf32>
    %17 = arith.mulf %14, %16 : vector<8x128xf32>
    %c0_11 = arith.constant 0 : index
    %c0_12 = arith.constant 0 : index
    %18 = vector.load %arg8[%c0_11, %c0_12] : memref<8x1xf32, #tpu.memory_space<vmem>>, vector<8x1xf32>
    %19 = vector.broadcast %18 : vector<8x1xf32> to vector<8x128xf32>
    %20 = arith.addf %17, %19 : vector<8x128xf32>
    %cst_13 = arith.constant 0.000000e+00 : f32
    %21 = vector.broadcast %cst_13 : f32 to vector<8x128xf32>
    %22 = arith.maximumf %20, %21 : vector<8x128xf32>
    %23 = arith.truncf %22 : vector<8x128xf32> to vector<8x128xbf16>
    %c0_14 = arith.constant 0 : index
    %c0_15 = arith.constant 0 : index
    %c0_16 = arith.constant 0 : index
    %24 = vector.load %arg4[%c0_14, %c0_15, %c0_16] : memref<1x32x128xbf16, #tpu.memory_space<vmem>>, vector<1x32x128xbf16>
    %25 = vector.shape_cast %24 : vector<1x32x128xbf16> to vector<32x128xbf16>
    %26 = arith.extf %25 : vector<32x128xbf16> to vector<32x128xf32>
    %c0_17 = arith.constant 0 : index
    %c0_18 = arith.constant 0 : index
    %27 = vector.load %arg9[%c0_17, %c0_18] : memref<32x1xf32, #tpu.memory_space<vmem>>, vector<32x1xf32>
    %28 = vector.broadcast %27 : vector<32x1xf32> to vector<32x128xf32>
    %29 = arith.mulf %26, %28 : vector<32x128xf32>
    %c0_19 = arith.constant 0 : index
    %c0_20 = arith.constant 0 : index
    %30 = vector.load %arg10[%c0_19, %c0_20] : memref<32x1xf32, #tpu.memory_space<vmem>>, vector<32x1xf32>
    %31 = vector.broadcast %30 : vector<32x1xf32> to vector<32x128xf32>
    %32 = arith.addf %29, %31 : vector<32x128xf32>
    %cst_21 = arith.constant 0.000000e+00 : f32
    %33 = vector.broadcast %cst_21 : f32 to vector<32x128xf32>
    %34 = arith.maximumf %32, %33 : vector<32x128xf32>
    %35 = arith.truncf %34 : vector<32x128xf32> to vector<32x128xbf16>
    %cst_22 = arith.constant dense<0.000000e+00> : vector<128x128xf32>
    %36 = tpu.matmul %23, %11, %cst_22 {dimension_numbers = #tpu.dot_dimension_numbers<[0], [0], [1], [1], [0, 1, 1, 1], [], []>} : vector<8x128xbf16>, vector<8x128xbf16>, vector<128x128xf32> -> vector<128x128xf32>
    %cst_23 = arith.constant dense<0xFF800000> : vector<128xf32>
    %37 = vector.multi_reduction <maximumf>, %36, %cst_23 [0] : vector<128x128xf32> to vector<128xf32>
    %38 = vector.shape_cast %37 : vector<128xf32> to vector<1x128xf32>
    %39 = vector.broadcast %38 : vector<1x128xf32> to vector<128x128xf32>
    %40 = arith.subf %36, %39 : vector<128x128xf32>
    %41 = math.exp %40 : vector<128x128xf32>
    %cst_24 = arith.constant dense<0.000000e+00> : vector<128xf32>
    %42 = vector.multi_reduction <add>, %41, %cst_24 [0] : vector<128x128xf32> to vector<128xf32>
    %43 = vector.shape_cast %42 : vector<128xf32> to vector<1x128xf32>
    %44 = arith.truncf %41 : vector<128x128xf32> to vector<128x128xbf16>
    %cst_25 = arith.constant dense<0.000000e+00> : vector<32x128xf32>
    %45 = tpu.matmul %35, %44, %cst_25 {dimension_numbers = #tpu.dot_dimension_numbers<[1], [0], [0], [1], [0, 0, 1, 1], [], []>} : vector<32x128xbf16>, vector<128x128xbf16>, vector<32x128xf32> -> vector<32x128xf32>
    %46 = tpu.reciprocal %43 {approx = true} : vector<1x128xf32> -> vector<1x128xf32>
    %47 = vector.broadcast %46 : vector<1x128xf32> to vector<32x128xf32>
    %48 = arith.mulf %45, %47 : vector<32x128xf32>
    %c0_26 = arith.constant 0 : index
    %c0_27 = arith.constant 0 : index
    %49 = vector.load %arg11[%c0_26, %c0_27] : memref<32x32xbf16, #tpu.memory_space<vmem>>, vector<32x32xbf16>
    %50 = arith.truncf %48 : vector<32x128xf32> to vector<32x128xbf16>
    %cst_28 = arith.constant dense<0.000000e+00> : vector<32x128xf32>
    %51 = tpu.matmul %49, %50, %cst_28 {dimension_numbers = #tpu.dot_dimension_numbers<[1], [0], [0], [1], [0, 0, 1, 1], [], []>} : vector<32x32xbf16>, vector<32x128xbf16>, vector<32x128xf32> -> vector<32x128xf32>
    %52 = arith.truncf %51 : vector<32x128xf32> to vector<32x128xbf16>
    %c0_29 = arith.constant 0 : index
    %c0_30 = arith.constant 0 : index
    %c0_31 = arith.constant 0 : index
    %53 = vector.load %arg12[%c0_29, %c0_30, %c0_31] : memref<1x32x128xbf16, #tpu.memory_space<vmem>>, vector<1x32x128xbf16>
    %54 = vector.shape_cast %53 : vector<1x32x128xbf16> to vector<32x128xbf16>
    %55 = vector.shape_cast %52 : vector<32x128xbf16> to vector<1x32x128xbf16>
    tpu.vector_store %arg12[%c0_29, %c0_30, %c0_31], %55 {strides = array<i32>} : memref<1x32x128xbf16, #tpu.memory_space<vmem>>, vector<1x32x128xbf16>,
    %cst_32 = arith.constant dense<0.000000e+00> : vector<32xf32>
    %56 = vector.multi_reduction <add>, %51, %cst_32 [1] : vector<32x128xf32> to vector<32xf32>
    %57 = vector.shape_cast %56 : vector<32xf32> to vector<32x1xf32>
    %c0_33 = arith.constant 0 : index
    %c0_34 = arith.constant 0 : index
    %c0_35 = arith.constant 0 : index
    %c0_36 = arith.constant 0 : index
    %58 = vector.load %arg13[%c0_33, %c0_34, %c0_35, %c0_36] : memref<1x1x32x2xf32, #tpu.memory_space<vmem>>, vector<1x1x32x1xf32>
    %59 = vector.shape_cast %58 : vector<1x1x32x1xf32> to vector<32x1xf32>
    %60 = vector.shape_cast %57 : vector<32x1xf32> to vector<1x1x32x1xf32>
    tpu.vector_store %arg13[%c0_33, %c0_34, %c0_35, %c0_36], %60 {strides = array<i32>} : memref<1x1x32x2xf32, #tpu.memory_space<vmem>>, vector<1x1x32x1xf32>,
    %61 = arith.mulf %51, %51 : vector<32x128xf32>
    %cst_37 = arith.constant dense<0.000000e+00> : vector<32xf32>
    %62 = vector.multi_reduction <add>, %61, %cst_37 [1] : vector<32x128xf32> to vector<32xf32>
    %63 = vector.shape_cast %62 : vector<32xf32> to vector<32x1xf32>
    %c0_38 = arith.constant 0 : index
    %c0_39 = arith.constant 0 : index
    %c0_40 = arith.constant 0 : index
    %c1 = arith.constant 1 : index
    %64 = vector.load %arg13[%c0_38, %c0_39, %c0_40, %c1] : memref<1x1x32x2xf32, #tpu.memory_space<vmem>>, vector<1x1x32x1xf32>
    %65 = vector.shape_cast %64 : vector<1x1x32x1xf32> to vector<32x1xf32>
    %66 = vector.shape_cast %63 : vector<32x1xf32> to vector<1x1x32x1xf32>
    tpu.vector_store %arg13[%c0_38, %c0_39, %c0_40, %c1], %66 {strides = array<i32>} : memref<1x1x32x2xf32, #tpu.memory_space<vmem>>, vector<1x1x32x1xf32>,
    return
  }
  func.func @transform_0(%arg0: i32, %arg1: i32) -> (i32, i32, i32) {
    %c0_i32 = arith.constant 0 : i32
    %c0_i32_0 = arith.constant 0 : i32
    return %arg0, %c0_i32, %arg1 : i32, i32, i32
  }
  func.func @transform_1(%arg0: i32, %arg1: i32) -> (i32, i32, i32) {
    %c0_i32 = arith.constant 0 : i32
    %c0_i32_0 = arith.constant 0 : i32
    %c0_i32_1 = arith.constant 0 : i32
    return %arg0, %c0_i32, %c0_i32_0 : i32, i32, i32
  }
  func.func @transform_2(%arg0: i32, %arg1: i32) -> (i32, i32, i32) {
    %c0_i32 = arith.constant 0 : i32
    %c0_i32_0 = arith.constant 0 : i32
    %c0_i32_1 = arith.constant 0 : i32
    return %arg0, %c0_i32, %c0_i32_0 : i32, i32, i32
  }
  func.func @transform_3(%arg0: i32, %arg1: i32) -> (i32, i32) {
    %c0_i32 = arith.constant 0 : i32
    %c0_i32_0 = arith.constant 0 : i32
    %c0_i32_1 = arith.constant 0 : i32
    return %c0_i32, %c0_i32_0 : i32, i32
  }
  func.func @transform_4(%arg0: i32, %arg1: i32) -> (i32, i32) {
    %c0_i32 = arith.constant 0 : i32
    %c0_i32_0 = arith.constant 0 : i32
    %c0_i32_1 = arith.constant 0 : i32
    return %c0_i32, %c0_i32_0 : i32, i32
  }
  func.func @transform_5(%arg0: i32, %arg1: i32) -> (i32, i32) {
    %c0_i32 = arith.constant 0 : i32
    %c0_i32_0 = arith.constant 0 : i32
    %c0_i32_1 = arith.constant 0 : i32
    return %c0_i32, %c0_i32_0 : i32, i32
  }
  func.func @transform_6(%arg0: i32, %arg1: i32) -> (i32, i32) {
    %c0_i32 = arith.constant 0 : i32
    %c0_i32_0 = arith.constant 0 : i32
    %c0_i32_1 = arith.constant 0 : i32
    return %c0_i32, %c0_i32_0 : i32, i32
  }
  func.func @transform_7(%arg0: i32, %arg1: i32) -> (i32, i32) {
    %c0_i32 = arith.constant 0 : i32
    %c0_i32_0 = arith.constant 0 : i32
    %c0_i32_1 = arith.constant 0 : i32
    return %c0_i32, %c0_i32_0 : i32, i32
  }
  func.func @transform_8(%arg0: i32, %arg1: i32) -> (i32, i32) {
    %c0_i32 = arith.constant 0 : i32
    %c0_i32_0 = arith.constant 0 : i32
    %c0_i32_1 = arith.constant 0 : i32
    return %c0_i32, %c0_i32_0 : i32, i32
  }
  func.func @transform_9(%arg0: i32, %arg1: i32) -> (i32, i32) {
    %c0_i32 = arith.constant 0 : i32
    %c0_i32_0 = arith.constant 0 : i32
    %c0_i32_1 = arith.constant 0 : i32
    return %c0_i32, %c0_i32_0 : i32, i32
  }
  func.func @transform_10(%arg0: i32, %arg1: i32) -> (i32, i32, i32) {
    %c0_i32 = arith.constant 0 : i32
    %c0_i32_0 = arith.constant 0 : i32
    return %arg0, %c0_i32, %arg1 : i32, i32, i32
  }
  func.func @transform_11(%arg0: i32, %arg1: i32) -> (i32, i32, i32, i32) {
    %c0_i32 = arith.constant 0 : i32
    %c0_i32_0 = arith.constant 0 : i32
    %c0_i32_1 = arith.constant 0 : i32
    return %arg0, %arg1, %c0_i32, %c0_i32_0 : i32, i32, i32, i32
  }
}

</mosaic_0001>

<llo_original>
// kernel: cci_layer_forward.3
$region0: #{cci_layer_forward.3}
  #allocation0 [shape = 'u32[]', space=smem, size = 0x4, offset = 0x4, fixed_abs, tag = 'smem constant byte address 0x4 - core index']
  #allocation1 [shape = 'u32[144,128]{1,0:T(1,128)}', space=vmem, size = 0x12000, scoped, tag = 'internal scratch']
  %s0 = inlined_call_operand.vmem [shape: f32[2,32,128], index: 0, kind: input, shape index: {}]
  %s1 = inlined_call_operand.vmem [shape: f32[2,32,128], index: 1, kind: input, shape index: {}]
  %s2 = inlined_call_operand.vmem [shape: f32[2,32,128], index: 2, kind: input, shape index: {}]
  %s3 = inlined_call_operand.vmem [shape: bf16[8,32], index: 3, kind: input, shape index: {}]
  %s4 = inlined_call_operand.vmem [shape: bf16[8,32], index: 4, kind: input, shape index: {}]
  %s5 = inlined_call_operand.vmem [shape: bf16[32,32], index: 5, kind: input, shape index: {}]
  %s6 = inlined_call_operand.vmem [shape: bf16[2,8,128], index: 6, kind: output, shape index: {0}]
  %s7 = inlined_call_operand.vmem [shape: bf16[2,8,128], index: 7, kind: output, shape index: {1}]
  %s8 = inlined_call_operand.vmem [shape: bf16[2,32,128], index: 8, kind: output, shape index: {2}]
  %s9 = inlined_call_operand.vmem [shape: f32[2,8,2], index: 9, kind: output, shape index: {3}]
  %s10 = inlined_call_operand.vmem [shape: f32[2,8,2], index: 10, kind: output, shape index: {4}]
  %s11 = inlined_call_operand.vmem [shape: f32[2,32,2], index: 11, kind: output, shape index: {5}]
  %12 = xla_tuple %s6, %s7, %s8, %s9, %s10, %s11
  %s13 = sld [smem:[#allocation0]]
  $region97: #{cci_layer_forward.3} parent=0
    _
  %s15 = ssub.s32 1, %s13
  %s16 = scalar_select 0, %s15, %s13
  loop: start=0, step=1, limit=4
  $region2: #{cci_layer_forward.3} parent=0 // loop_pre_header
    _
  $region3: #{cci_layer_forward.3} parent=0 // loop_header
    %s18 = sphi 0, %s22
    %p19 = scmp.ge.s32.totalorder %s18, 4
    %s28 = sphi 0, %s30
    %s31 = sphi 0, %s28
    %s32 = sphi 0, %s31
    %s48 = sphi 0, %s32
    %s54 = sphi 0, %s56
    %s57 = sphi 0, %s54
    %s58 = sphi 0, %s57
    %s74 = sphi 0, %s58
    %s80 = sphi 0, %s82
    %s83 = sphi 0, %s80
    %s84 = sphi 0, %s83
    %s100 = sphi 0, %s84
    %s104 = sphi 0, %s104
    %s106 = sphi 0, %s104
    %s107 = sphi 0, %s106
    %s121 = sphi 0, %s107
    %s125 = sphi 0, %s125
    %s127 = sphi 0, %s125
    %s128 = sphi 0, %s127
    %s142 = sphi 0, %s128
    %s146 = sphi 0, %s146
    %s148 = sphi 0, %s146
    %s149 = sphi 0, %s148
    %s163 = sphi 0, %s149
    %s169 = sphi 0, %s171
    %s172 = sphi 0, %s169
    %s173 = sphi 0, %s172
    %s189 = sphi 0, %s173
    %s195 = sphi 0, %s197
    %s198 = sphi 0, %s195
    %s199 = sphi 0, %s198
    %s215 = sphi 0, %s199
    %s221 = sphi 0, %s223
    %s224 = sphi 0, %s221
    %s225 = sphi 0, %s224
    %s241 = sphi 0, %s225
    %s247 = sphi 0, %s249
    %s250 = sphi 0, %s247
    %s251 = sphi 0, %s250
    %s267 = sphi 0, %s251
    %s273 = sphi 0, %s275
    %s276 = sphi 0, %s273
    %s277 = sphi 0, %s276
    %s293 = sphi 0, %s277
    %s299 = sphi 0, %s301
    %s302 = sphi 0, %s299
    %s303 = sphi 0, %s302
    %s319 = sphi 0, %s303
  $region4: #{cci_layer_forward.3} parent=0 // loop_header_branch
    %21 = sbr.rel (%p19) target = $region8
  $region5: #{cci_layer_forward.3} parent=0 // loop_body
    %s23 = ssub.s32 %s18, 1
    %s24 = ssub.s32 %s18, 2
    %s25 = sadd.s32 %s18, 1
    %s26 = ssub.s32 %s18, %s25
    %p27 = scmp.eq.s32.totalorder %s26, 0
    %s29 = sadd.s32 %s28, 1
    %s30 = scalar_select %p27, %s28, %s29
    %p33 = pneg %p27
    %p34 = scmp.eq.s32.totalorder %s18, 1
    %p35 = por %p33, %p34
    %p36 = scmp.ne.s32.totalorder %s28, %s31
    %p37 = scmp.eq.s32.totalorder %s18, 0
    %p38 = por %p36, %p37
    %p39 = scmp.ne.s32.totalorder %s28, %s31
    %p40 = scmp.eq.s32.totalorder %s23, 1
    %p41 = por %p39, %p40
    %p42 = scmp.ne.s32.totalorder %s31, %s32
    %p43 = scmp.eq.s32.totalorder %s23, 0
    %p44 = por %p42, %p43
    %p45 = scmp.ne.s32.totalorder %s31, %s32
    %p46 = scmp.eq.s32.totalorder %s24, 1
    %p47 = por %p45, %p46
    %p49 = scmp.ne.s32.totalorder %s32, %s48
    %p50 = scmp.eq.s32.totalorder %s24, 0
    %p51 = por %p49, %p50
    %s52 = ssub.s32 %s18, %s25
    %p53 = scmp.eq.s32.totalorder %s52, 0
    %s55 = sadd.s32 %s54, 1
    %s56 = scalar_select %p53, %s54, %s55
    %p59 = pneg %p53
    %p60 = scmp.eq.s32.totalorder %s18, 1
    %p61 = por %p59, %p60
    %p62 = scmp.ne.s32.totalorder %s54, %s57
    %p63 = scmp.eq.s32.totalorder %s18, 0
    %p64 = por %p62, %p63
    %p65 = scmp.ne.s32.totalorder %s54, %s57
    %p66 = scmp.eq.s32.totalorder %s23, 1
    %p67 = por %p65, %p66
    %p68 = scmp.ne.s32.totalorder %s57, %s58
    %p69 = scmp.eq.s32.totalorder %s23, 0
    %p70 = por %p68, %p69
    %p71 = scmp.ne.s32.totalorder %s57, %s58
    %p72 = scmp.eq.s32.totalorder %s24, 1
    %p73 = por %p71, %p72
    %p75 = scmp.ne.s32.totalorder %s58, %s74
    %p76 = scmp.eq.s32.totalorder %s24, 0
    %p77 = por %p75, %p76
    %s78 = ssub.s32 %s18, %s25
    %p79 = scmp.eq.s32.totalorder %s78, 0
    %s81 = sadd.s32 %s80, 1
    %s82 = scalar_select %p79, %s80, %s81
    %p85 = pneg %p79
    %p86 = scmp.eq.s32.totalorder %s18, 1
    %p87 = por %p85, %p86
    %p88 = scmp.ne.s32.totalorder %s80, %s83
    %p89 = scmp.eq.s32.totalorder %s18, 0
    %p90 = por %p88, %p89
    %p91 = scmp.ne.s32.totalorder %s80, %s83
    %p92 = scmp.eq.s32.totalorder %s23, 1
    %p93 = por %p91, %p92
    %p94 = scmp.ne.s32.totalorder %s83, %s84
    %p95 = scmp.eq.s32.totalorder %s23, 0
    %p96 = por %p94, %p95
    %p97 = scmp.ne.s32.totalorder %s83, %s84
    %p98 = scmp.eq.s32.totalorder %s24, 1
    %p99 = por %p97, %p98
    %p101 = scmp.ne.s32.totalorder %s84, %s100
    %p102 = scmp.eq.s32.totalorder %s24, 0
    %p103 = por %p101, %p102
    %s105 = sadd.s32 %s104, 1
    %p108 = scmp.eq.s32.totalorder %s18, 1
    %p109 = scmp.ne.s32.totalorder %s104, %s106
    %p110 = scmp.eq.s32.totalorder %s18, 0
    %p111 = por %p109, %p110
    %p112 = scmp.ne.s32.totalorder %s104, %s106
    %p113 = scmp.eq.s32.totalorder %s23, 1
    %p114 = por %p112, %p113
    %p115 = scmp.ne.s32.totalorder %s106, %s107
    %p116 = scmp.eq.s32.totalorder %s23, 0
    %p117 = por %p115, %p116
    %p118 = scmp.ne.s32.totalorder %s106, %s107
    %p119 = scmp.eq.s32.totalorder %s24, 1
    %p120 = por %p118, %p119
    %p122 = scmp.ne.s32.totalorder %s107, %s121
    %p123 = scmp.eq.s32.totalorder %s24, 0
    %p124 = por %p122, %p123
    %s126 = sadd.s32 %s125, 1
    %p129 = scmp.eq.s32.totalorder %s18, 1
    %p130 = scmp.ne.s32.totalorder %s125, %s127
    %p131 = scmp.eq.s32.totalorder %s18, 0
    %p132 = por %p130, %p131
    %p133 = scmp.ne.s32.totalorder %s125, %s127
    %p134 = scmp.eq.s32.totalorder %s23, 1
    %p135 = por %p133, %p134
    %p136 = scmp.ne.s32.totalorder %s127, %s128
    %p137 = scmp.eq.s32.totalorder %s23, 0
    %p138 = por %p136, %p137
    %p139 = scmp.ne.s32.totalorder %s127, %s128
    %p140 = scmp.eq.s32.totalorder %s24, 1
    %p141 = por %p139, %p140
    %p143 = scmp.ne.s32.totalorder %s128, %s142
    %p144 = scmp.eq.s32.totalorder %s24, 0
    %p145 = por %p143, %p144
    %s147 = sadd.s32 %s146, 1
    %p150 = scmp.eq.s32.totalorder %s18, 1
    %p151 = scmp.ne.s32.totalorder %s146, %s148
    %p152 = scmp.eq.s32.totalorder %s18, 0
    %p153 = por %p151, %p152
    %p154 = scmp.ne.s32.totalorder %s146, %s148
    %p155 = scmp.eq.s32.totalorder %s23, 1
    %p156 = por %p154, %p155
    %p157 = scmp.ne.s32.totalorder %s148, %s149
    %p158 = scmp.eq.s32.totalorder %s23, 0
    %p159 = por %p157, %p158
    %p160 = scmp.ne.s32.totalorder %s148, %s149
    %p161 = scmp.eq.s32.totalorder %s24, 1
    %p162 = por %p160, %p161
    %p164 = scmp.ne.s32.totalorder %s149, %s163
    %p165 = scmp.eq.s32.totalorder %s24, 0
    %p166 = por %p164, %p165
    %s167 = ssub.s32 %s18, %s25
    %p168 = scmp.eq.s32.totalorder %s167, 0
    %s170 = sadd.s32 %s169, 1
    %s171 = scalar_select %p168, %s169, %s170
    %p174 = pneg %p168
    %p175 = scmp.eq.s32.totalorder %s18, 1
    %p176 = por %p174, %p175
    %p177 = scmp.ne.s32.totalorder %s169, %s172
    %p178 = scmp.eq.s32.totalorder %s18, 0
    %p179 = por %p177, %p178
    %p180 = scmp.ne.s32.totalorder %s169, %s172
    %p181 = scmp.eq.s32.totalorder %s23, 1
    %p182 = por %p180, %p181
    %p183 = scmp.ne.s32.totalorder %s172, %s173
    %p184 = scmp.eq.s32.totalorder %s23, 0
    %p185 = por %p183, %p184
    %p186 = scmp.ne.s32.totalorder %s172, %s173
    %p187 = scmp.eq.s32.totalorder %s24, 1
    %p188 = por %p186, %p187
    %p190 = scmp.ne.s32.totalorder %s173, %s189
    %p191 = scmp.eq.s32.totalorder %s24, 0
    %p192 = por %p190, %p191
    %s193 = ssub.s32 %s18, %s25
    %p194 = scmp.eq.s32.totalorder %s193, 0
    %s196 = sadd.s32 %s195, 1
    %s197 = scalar_select %p194, %s195, %s196
    %p200 = pneg %p194
    %p201 = scmp.eq.s32.totalorder %s18, 1
    %p202 = por %p200, %p201
    %p203 = scmp.ne.s32.totalorder %s195, %s198
    %p204 = scmp.eq.s32.totalorder %s18, 0
    %p205 = por %p203, %p204
    %p206 = scmp.ne.s32.totalorder %s195, %s198
    %p207 = scmp.eq.s32.totalorder %s23, 1
    %p208 = por %p206, %p207
    %p209 = scmp.ne.s32.totalorder %s198, %s199
    %p210 = scmp.eq.s32.totalorder %s23, 0
    %p211 = por %p209, %p210
    %p212 = scmp.ne.s32.totalorder %s198, %s199
    %p213 = scmp.eq.s32.totalorder %s24, 1
    %p214 = por %p212, %p213
    %p216 = scmp.ne.s32.totalorder %s199, %s215
    %p217 = scmp.eq.s32.totalorder %s24, 0
    %p218 = por %p216, %p217
    %s219 = ssub.s32 %s18, %s25
    %p220 = scmp.eq.s32.totalorder %s219, 0
    %s222 = sadd.s32 %s221, 1
    %s223 = scalar_select %p220, %s221, %s222
    %p226 = pneg %p220
    %p227 = scmp.eq.s32.totalorder %s18, 1
    %p228 = por %p226, %p227
    %p229 = scmp.ne.s32.totalorder %s221, %s224
    %p230 = scmp.eq.s32.totalorder %s18, 0
    %p231 = por %p229, %p230
    %p232 = scmp.ne.s32.totalorder %s221, %s224
    %p233 = scmp.eq.s32.totalorder %s23, 1
    %p234 = por %p232, %p233
    %p235 = scmp.ne.s32.totalorder %s224, %s225
    %p236 = scmp.eq.s32.totalorder %s23, 0
    %p237 = por %p235, %p236
    %p238 = scmp.ne.s32.totalorder %s224, %s225
    %p239 = scmp.eq.s32.totalorder %s24, 1
    %p240 = por %p238, %p239
    %p242 = scmp.ne.s32.totalorder %s225, %s241
    %p243 = scmp.eq.s32.totalorder %s24, 0
    %p244 = por %p242, %p243
    %s245 = ssub.s32 %s18, %s25
    %p246 = scmp.eq.s32.totalorder %s245, 0
    %s248 = sadd.s32 %s247, 1
    %s249 = scalar_select %p246, %s247, %s248
    %p252 = pneg %p246
    %p253 = scmp.eq.s32.totalorder %s18, 1
    %p254 = por %p252, %p253
    %p255 = scmp.ne.s32.totalorder %s247, %s250
    %p256 = scmp.eq.s32.totalorder %s18, 0
    %p257 = por %p255, %p256
    %p258 = scmp.ne.s32.totalorder %s247, %s250
    %p259 = scmp.eq.s32.totalorder %s23, 1
    %p260 = por %p258, %p259
    %p261 = scmp.ne.s32.totalorder %s250, %s251
    %p262 = scmp.eq.s32.totalorder %s23, 0
    %p263 = por %p261, %p262
    %p264 = scmp.ne.s32.totalorder %s250, %s251
    %p265 = scmp.eq.s32.totalorder %s24, 1
    %p266 = por %p264, %p265
    %p268 = scmp.ne.s32.totalorder %s251, %s267
    %p269 = scmp.eq.s32.totalorder %s24, 0
    %p270 = por %p268, %p269
    %s271 = ssub.s32 %s18, %s25
    %p272 = scmp.eq.s32.totalorder %s271, 0
    %s274 = sadd.s32 %s273, 1
    %s275 = scalar_select %p272, %s273, %s274
    %p278 = pneg %p272
    %p279 = scmp.eq.s32.totalorder %s18, 1
    %p280 = por %p278, %p279
    %p281 = scmp.ne.s32.totalorder %s273, %s276
    %p282 = scmp.eq.s32.totalorder %s18, 0
    %p283 = por %p281, %p282
    %p284 = scmp.ne.s32.totalorder %s273, %s276
    %p285 = scmp.eq.s32.totalorder %s23, 1
    %p286 = por %p284, %p285
    %p287 = scmp.ne.s32.totalorder %s276, %s277
    %p288 = scmp.eq.s32.totalorder %s23, 0
    %p289 = por %p287, %p288
    %p290 = scmp.ne.s32.totalorder %s276, %s277
    %p291 = scmp.eq.s32.totalorder %s24, 1
    %p292 = por %p290, %p291
    %p294 = scmp.ne.s32.totalorder %s277, %s293
    %p295 = scmp.eq.s32.totalorder %s24, 0
    %p296 = por %p294, %p295
    %s297 = ssub.s32 %s18, %s25
    %p298 = scmp.eq.s32.totalorder %s297, 0
    %s300 = sadd.s32 %s299, 1
    %s301 = scalar_select %p298, %s299, %s300
    %p304 = pneg %p298
    %p305 = scmp.eq.s32.totalorder %s18, 1
    %p306 = por %p304, %p305
    %p307 = scmp.ne.s32.totalorder %s299, %s302
    %p308 = scmp.eq.s32.totalorder %s18, 0
    %p309 = por %p307, %p308
    %p310 = scmp.ne.s32.totalorder %s299, %s302
    %p311 = scmp.eq.s32.totalorder %s23, 1
    %p312 = por %p310, %p311
    %p313 = scmp.ne.s32.totalorder %s302, %s303
    %p314 = scmp.eq.s32.totalorder %s23, 0
    %p315 = por %p313, %p314
    %p316 = scmp.ne.s32.totalorder %s302, %s303
    %p317 = scmp.eq.s32.totalorder %s24, 1
    %p318 = por %p316, %p317
    %p320 = scmp.ne.s32.totalorder %s303, %s319
    %p321 = scmp.eq.s32.totalorder %s24, 0
    %p322 = por %p320, %p321
    %p323 = scmp.le.s32.totalorder 1, %s18
    %p324 = scmp.lt.s32.totalorder %s18, 3
    %p325 = pnand %p323, %p324
    %p326 = pneg %p325
    // Predicated region
    $region9: #{cci_layer_forward.3} parent=5 // pred_check
      _
    $region10: #{cci_layer_forward.3} parent=5 // pred_check_branch
      %328 = sbr.rel (%p325) target = $region12
    $region11: #{cci_layer_forward.3} parent=5 // pred_region
      %s329 = ssub.s32 %s18, 1
      // Predicated region
      $region13: #{cci_layer_forward.3} parent=11 // pred_check
        %p330 = pneg %p117
      $region14: #{cci_layer_forward.3} parent=11 // pred_check_branch
        %332 = sbr.rel (%p330) target = $region16
      $region15: #{cci_layer_forward.3} parent=11 // pred_region
        _
      $region16: #{cci_layer_forward.3} parent=11 // pred_fallthru
        _
      // Predicated region
      $region17: #{cci_layer_forward.3} parent=11 // pred_check
        %p333 = pneg %p138
      $region18: #{cci_layer_forward.3} parent=11 // pred_check_branch
        %335 = sbr.rel (%p333) target = $region20
      $region19: #{cci_layer_forward.3} parent=11 // pred_region
        _
      $region20: #{cci_layer_forward.3} parent=11 // pred_fallthru
        _
      // Predicated region
      $region21: #{cci_layer_forward.3} parent=11 // pred_check
        %p336 = pneg %p159
      $region22: #{cci_layer_forward.3} parent=11 // pred_check_branch
        %338 = sbr.rel (%p336) target = $region24
      $region23: #{cci_layer_forward.3} parent=11 // pred_region
        _
      $region24: #{cci_layer_forward.3} parent=11 // pred_fallthru
        _
    $region12: #{cci_layer_forward.3} parent=5 // pred_fallthru
      _
    %p339 = scmp.lt.s32.totalorder %s18, 2
    // Predicated region
    $region25: #{cci_layer_forward.3} parent=5 // pred_check
      %p340 = pneg %p339
    $region26: #{cci_layer_forward.3} parent=5 // pred_check_branch
      %342 = sbr.rel (%p340) target = $region28
    $region27: #{cci_layer_forward.3} parent=5 // pred_region
      // Predicated region
      $region29: #{cci_layer_forward.3} parent=27 // pred_check
        %p343 = pneg %p38
      $region30: #{cci_layer_forward.3} parent=27 // pred_check_branch
        %345 = sbr.rel (%p343) target = $region32
      $region31: #{cci_layer_forward.3} parent=27 // pred_region
        %p346 = scmp.lt.s32.totalorder %s18, 1
        %s347 = scalar_select %p346, %s18, 1
        %s348 = smul.addr %s347, 4
        %s349 = smul.addr %s348, 8
        %s350 = scalar_lea.vmem %s0, %s349
      $region32: #{cci_layer_forward.3} parent=27 // pred_fallthru
        _
      // Predicated region
      $region33: #{cci_layer_forward.3} parent=27 // pred_check
        %p351 = pneg %p64
      $region34: #{cci_layer_forward.3} parent=27 // pred_check_branch
        %353 = sbr.rel (%p351) target = $region36
      $region35: #{cci_layer_forward.3} parent=27 // pred_region
        %p354 = scmp.lt.s32.totalorder %s18, 1
        %s355 = scalar_select %p354, %s18, 1
        %s356 = smul.addr %s355, 4
        %s357 = smul.addr %s356, 8
        %s358 = scalar_lea.vmem %s1, %s357
      $region36: #{cci_layer_forward.3} parent=27 // pred_fallthru
        _
      // Predicated region
      $region37: #{cci_layer_forward.3} parent=27 // pred_check
        %p359 = pneg %p90
      $region38: #{cci_layer_forward.3} parent=27 // pred_check_branch
        %361 = sbr.rel (%p359) target = $region40
      $region39: #{cci_layer_forward.3} parent=27 // pred_region
        %p362 = scmp.lt.s32.totalorder %s18, 1
        %s363 = scalar_select %p362, %s18, 1
        %s364 = smul.addr %s363, 4
        %s365 = smul.addr %s364, 8
        %s366 = scalar_lea.vmem %s2, %s365
      $region40: #{cci_layer_forward.3} parent=27 // pred_fallthru
        _
    $region28: #{cci_layer_forward.3} parent=5 // pred_fallthru
      _
    %p367 = scmp.le.s32.totalorder 1, %s18
    %p368 = scmp.lt.s32.totalorder %s18, 3
    %p369 = pnand %p367, %p368
    %p370 = pneg %p369
    // Predicated region
    $region41: #{cci_layer_forward.3} parent=5 // pred_check
      _
    $region42: #{cci_layer_forward.3} parent=5 // pred_check_branch
      %372 = sbr.rel (%p369) target = $region44
    $region43: #{cci_layer_forward.3} parent=5 // pred_region
      %s373 = ssub.s32 %s18, 1
      %p374 = scmp.lt.s32.totalorder %s23, 1
      %s375 = scalar_select %p374, %s23, 1
      %s376 = smul.addr %s375, 4
      %s377 = smul.addr %s376, 8
      %s378 = scalar_lea.vmem %s0, %s377
      %p379 = pneg %p44
      %p380 = pneg %p41
      %p381 = scmp.lt.s32.totalorder %s23, 1
      %s382 = scalar_select %p381, %s23, 1
      %s383 = smul.addr %s382, 4
      %s384 = smul.addr %s383, 8
      %s385 = scalar_lea.vmem %s1, %s384
      %p386 = pneg %p70
      %p387 = pneg %p67
      %p388 = scmp.lt.s32.totalorder %s23, 1
      %s389 = scalar_select %p388, %s23, 1
      %s390 = smul.addr %s389, 4
      %s391 = smul.addr %s390, 8
      %s392 = scalar_lea.vmem %s2, %s391
      %p393 = pneg %p96
      %p394 = pneg %p93
      %p395 = pneg %p117
      %p396 = pneg %p114
      %p397 = pneg %p138
      %p398 = pneg %p135
      %p399 = pneg %p159
      %p400 = pneg %p156
      %p401 = pneg %p185
      %p402 = pneg %p182
      %p403 = scmp.lt.s32.totalorder %s23, 1
      %s404 = scalar_select %p403, %s23, 1
      %s405 = smul.addr %s404, 4
      %s406 = scalar_lea.vmem %s6, %s405
      %p407 = pneg %p211
      %p408 = pneg %p208
      %p409 = scmp.lt.s32.totalorder %s23, 1
      %s410 = scalar_select %p409, %s23, 1
      %s411 = smul.addr %s410, 4
      %s412 = scalar_lea.vmem %s7, %s411
      %p413 = pneg %p237
      %p414 = pneg %p234
      %p415 = scmp.lt.s32.totalorder %s23, 1
      %s416 = scalar_select %p415, %s23, 1
      %s417 = smul.addr %s416, 4
      %s418 = smul.addr %s417, 4
      %s419 = scalar_lea.vmem %s8, %s418
      %p420 = pneg %p263
      %p421 = pneg %p260
      %p422 = scmp.lt.s32.totalorder %s23, 1
      %s423 = scalar_select %p422, %s23, 1
      %s424 = smul.addr %s423, 8
      %s425 = scalar_lea.vmem %s9, %s424
      %p426 = pneg %p289
      %p427 = pneg %p286
      %p428 = scmp.lt.s32.totalorder %s23, 1
      %s429 = scalar_select %p428, %s23, 1
      %s430 = smul.addr %s429, 8
      %s431 = scalar_lea.vmem %s10, %s430
      %p432 = pneg %p315
      %p433 = pneg %p312
      %p434 = scmp.lt.s32.totalorder %s23, 1
      %s435 = scalar_select %p434, %s23, 1
      %s436 = smul.addr %s435, 4
      %s437 = smul.addr %s436, 8
      %s438 = scalar_lea.vmem %s11, %s437
      %p439 = scmp.lt.s32.totalorder %s23, 1
      %s440 = scalar_select %p439, %s23, 1
      %s441 = smul.addr %s440, 4
      %s442 = smul.addr %s441, 8
      %s443 = scalar_lea.vmem %s0, %s442
      %p444 = scmp.lt.s32.totalorder %s23, 1
      %s445 = scalar_select %p444, %s23, 1
      %s446 = smul.addr %s445, 4
      %s447 = smul.addr %s446, 8
      %s448 = scalar_lea.vmem %s1, %s447
      %p449 = scmp.lt.s32.totalorder %s23, 1
      %s450 = scalar_select %p449, %s23, 1
      %s451 = smul.addr %s450, 4
      %s452 = smul.addr %s451, 8
      %s453 = scalar_lea.vmem %s2, %s452
      %p454 = scmp.lt.s32.totalorder %s23, 1
      %s455 = scalar_select %p454, %s23, 1
      %s456 = smul.addr %s455, 4
      %s457 = scalar_lea.vmem %s6, %s456
      %p458 = scmp.lt.s32.totalorder %s23, 1
      %s459 = scalar_select %p458, %s23, 1
      %s460 = smul.addr %s459, 4
      %s461 = scalar_lea.vmem %s7, %s460
      %p462 = scmp.lt.s32.totalorder %s23, 1
      %s463 = scalar_select %p462, %s23, 1
      %s464 = smul.addr %s463, 4
      %s465 = smul.addr %s464, 4
      %s466 = scalar_lea.vmem %s8, %s465
      %p467 = scmp.lt.s32.totalorder %s23, 1
      %s468 = scalar_select %p467, %s23, 1
      %s469 = smul.addr %s468, 8
      %s470 = scalar_lea.vmem %s9, %s469
      %p471 = scmp.lt.s32.totalorder %s23, 1
      %s472 = scalar_select %p471, %s23, 1
      %s473 = smul.addr %s472, 8
      %s474 = scalar_lea.vmem %s10, %s473
      %p475 = scmp.lt.s32.totalorder %s23, 1
      %s476 = scalar_select %p475, %s23, 1
      %s477 = smul.addr %s476, 4
      %s478 = smul.addr %s477, 8
      %s479 = scalar_lea.vmem %s11, %s478
      %v481 = vld [vmem:[%s3] sm:$0xf]
      %v482 = vld [vmem:[%s443] sm:$0xff]
      %v483 = vld [vmem:[%s443 + $0x8] sm:$0xff]
      %v484 = vld [vmem:[%s443 + $0x10] sm:$0xff]
      %v485 = vld [vmem:[%s443 + $0x18] sm:$0xff]
      %v486 = vpack.c.bf16 %v483, %v482
      %v487 = vpack.c.bf16 %v485, %v484
      %vm488 = vcmask 261120
      %v490 = vsel %vm488, %v481, 0
      %492 = vmatprep.subr.bf16.mxu0 0
      %493 = vmatpush1.bf16.msra.mxu0 0
      %494 = vmatprep.subr.bf16.mxu0 0
      %495 = vmatpush1.bf16.msra.mxu0 0
      %496 = vmatprep.subr.bf16.mxu0 0
      %497 = vmatpush1.bf16.msra.mxu0 0
      %498 = vmatprep.subr.bf16.mxu0 0
      %499 = vmatpush1.bf16.msra.mxu0 0
      %500 = vmatprep.subr.bf16.mxu0 0
      %501 = vmatpush1.bf16.msra.mxu0 0
      %502 = vmatprep.subr.bf16.mxu0 0
      %503 = vmatpush1.bf16.msra.mxu0 0
      %504 = vmatprep.subr.bf16.mxu0 0
      %505 = vmatpush1.bf16.msra.mxu0 %v487
      %506 = vmatprep.subr.bf16.mxu0 0
      %507 = vmatpush1.bf16.msra.mxu0 %v486
      %508 = vmatprep.subr.bf16.mxu0 0
      %509 = vmatpush2.bf16.msra.mxu0 0
      %510 = vmatprep.subr.bf16.mxu0 0
      %511 = vmatpush2.bf16.msra.mxu0 0
      %512 = vmatprep.subr.bf16.mxu0 0
      %513 = vmatpush2.bf16.msra.mxu0 0
      %514 = vmatprep.subr.bf16.mxu0 0
      %515 = vmatpush2.bf16.msra.mxu0 0
      %516 = vmatprep.subr.bf16.mxu0 0
      %517 = vmatpush2.bf16.msra.mxu0 0
      %518 = vmatprep.subr.bf16.mxu0 0
      %519 = vmatpush2.bf16.msra.mxu0 0
      %520 = vmatprep.subr.bf16.mxu0 0
      %521 = vmatpush2.bf16.msra.mxu0 0
      %522 = vmatprep.subr.bf16.mxu0 0
      %523 = vmatpush2.bf16.msra.mxu0 0
      %524 = vmatprep.mubr.bf16.mxu0 0
      %525 = vmatmul.mubr.bf16.gmra.mxu0 %v490
      %v526 = vpop.f32.mrf.mxu0
      %v527 = vadd.f32 0.0, %v526
      %v528 = vpop.f32.mrf.mxu0
      %v529 = vpop.f32.mrf.mxu0
      %v530 = vpop.f32.mrf.mxu0
      %531 = vdwg.mxu0
      %v532 = vpack.c.bf16 %v527, %v527
      %533 = vst [vmem:[%s457] sm:$0xf] %v532
      %534 = vadd.xlane.f32.xlu0 %v527
      %v535 = vpop.xlane.xlu0 %534
      %vm536 = vcmask 7168
      %537 = vst.msk [vmem:[%s470] sm:$0xff] %vm536, %v535
      %v538 = vmul.f32 %v527, %v527
      %539 = vadd.xlane.f32.xlu0 %v538
      %v540 = vpop.xlane.xlu0 %539
      %vm541 = vcmask 15368
      %542 = vst.msk [vmem:[%s470] sm:$0xff] %vm541, %v540
      %v543 = vld [vmem:[%s4] sm:$0xf]
      %v544 = vld [vmem:[%s448] sm:$0xff]
      %v545 = vld [vmem:[%s448 + $0x8] sm:$0xff]
      %v546 = vld [vmem:[%s448 + $0x10] sm:$0xff]
      %v547 = vld [vmem:[%s448 + $0x18] sm:$0xff]
      %v548 = vpack.c.bf16 %v545, %v544
      %v549 = vpack.c.bf16 %v547, %v546
      %v551 = vsel %vm488, %v543, 0
      %553 = vmatprep.subr.bf16.mxu0 0
      %554 = vmatpush1.bf16.msra.mxu0 0
      %555 = vmatprep.subr.bf16.mxu0 0
      %556 = vmatpush1.bf16.msra.mxu0 0
      %557 = vmatprep.subr.bf16.mxu0 0
      %558 = vmatpush1.bf16.msra.mxu0 0
      %559 = vmatprep.subr.bf16.mxu0 0
      %560 = vmatpush1.bf16.msra.mxu0 0
      %561 = vmatprep.subr.bf16.mxu0 0
      %562 = vmatpush1.bf16.msra.mxu0 0
      %563 = vmatprep.subr.bf16.mxu0 0
      %564 = vmatpush1.bf16.msra.mxu0 0
      %565 = vmatprep.subr.bf16.mxu0 0
      %566 = vmatpush1.bf16.msra.mxu0 %v549
      %567 = vmatprep.subr.bf16.mxu0 0
      %568 = vmatpush1.bf16.msra.mxu0 %v548
      %569 = vmatprep.subr.bf16.mxu0 0
      %570 = vmatpush2.bf16.msra.mxu0 0
      %571 = vmatprep.subr.bf16.mxu0 0
      %572 = vmatpush2.bf16.msra.mxu0 0
      %573 = vmatprep.subr.bf16.mxu0 0
      %574 = vmatpush2.bf16.msra.mxu0 0
      %575 = vmatprep.subr.bf16.mxu0 0
      %576 = vmatpush2.bf16.msra.mxu0 0
      %577 = vmatprep.subr.bf16.mxu0 0
      %578 = vmatpush2.bf16.msra.mxu0 0
      %579 = vmatprep.subr.bf16.mxu0 0
      %580 = vmatpush2.bf16.msra.mxu0 0
      %581 = vmatprep.subr.bf16.mxu0 0
      %582 = vmatpush2.bf16.msra.mxu0 0
      %583 = vmatprep.subr.bf16.mxu0 0
      %584 = vmatpush2.bf16.msra.mxu0 0
      %585 = vmatprep.mubr.bf16.mxu0 0
      %586 = vmatmul.mubr.bf16.gmra.mxu0 %v551
      %v587 = vpop.f32.mrf.mxu0
      %v588 = vadd.f32 0.0, %v587
      %v589 = vpop.f32.mrf.mxu0
      %v590 = vpop.f32.mrf.mxu0
      %v591 = vpop.f32.mrf.mxu0
      %592 = vdwg.mxu0
      %v593 = vpack.c.bf16 %v588, %v588
      %594 = vst [vmem:[%s461] sm:$0xf] %v593
      %595 = vadd.xlane.f32.xlu0 %v588
      %v596 = vpop.xlane.xlu0 %595
      %597 = vst.msk [vmem:[%s474] sm:$0xff] %vm536, %v596
      %v598 = vmul.f32 %v588, %v588
      %599 = vadd.xlane.f32.xlu0 %v598
      %v600 = vpop.xlane.xlu0 %599
      %601 = vst.msk [vmem:[%s474] sm:$0xff] %vm541, %v600
      %v602 = vld [vmem:[%s5] sm:$0xf]
      %v603 = vld [vmem:[%s5 + $0x4] sm:$0xf]
      %v604 = vld [vmem:[%s5 + $0x8] sm:$0xf]
      %v605 = vld [vmem:[%s5 + $0xc] sm:$0xf]
      %v606 = vld [vmem:[%s453] sm:$0xff]
      %v607 = vld [vmem:[%s453 + $0x8] sm:$0xff]
      %v608 = vld [vmem:[%s453 + $0x10] sm:$0xff]
      %v609 = vld [vmem:[%s453 + $0x18] sm:$0xff]
      %v610 = vpack.c.bf16 %v607, %v606
      %v611 = vpack.c.bf16 %v609, %v608
      %v616 = vunpack.c.l.b16 %v602
      %v617 = vunpack.c.l.b16 %v603
      %v618 = vunpack.c.l.b16 %v604
      %v619 = vunpack.c.l.b16 %v605
      %v620 = vpack.c.b16 %v617, %v616
      %v621 = vpack.c.b16 %v619, %v618
      %v623 = vsel %vm488, %v620, 0
      %v626 = vsel %vm488, %v621, 0
      %628 = vmatprep.subr.bf16.mxu0 0
      %629 = vmatpush1.bf16.msra.mxu0 0
      %630 = vmatprep.subr.bf16.mxu0 0
      %631 = vmatpush1.bf16.msra.mxu0 0
      %632 = vmatprep.subr.bf16.mxu0 0
      %633 = vmatpush1.bf16.msra.mxu0 0
      %634 = vmatprep.subr.bf16.mxu0 0
      %635 = vmatpush1.bf16.msra.mxu0 0
      %636 = vmatprep.subr.bf16.mxu0 0
      %637 = vmatpush1.bf16.msra.mxu0 0
      %638 = vmatprep.subr.bf16.mxu0 0
      %639 = vmatpush1.bf16.msra.mxu0 0
      %640 = vmatprep.subr.bf16.mxu0 0
      %641 = vmatpush1.bf16.msra.mxu0 %v611
      %642 = vmatprep.subr.bf16.mxu0 0
      %643 = vmatpush1.bf16.msra.mxu0 %v610
      %644 = vmatprep.subr.bf16.mxu0 0
      %645 = vmatpush2.bf16.msra.mxu0 0
      %646 = vmatprep.subr.bf16.mxu0 0
      %647 = vmatpush2.bf16.msra.mxu0 0
      %648 = vmatprep.subr.bf16.mxu0 0
      %649 = vmatpush2.bf16.msra.mxu0 0
      %650 = vmatprep.subr.bf16.mxu0 0
      %651 = vmatpush2.bf16.msra.mxu0 0
      %652 = vmatprep.subr.bf16.mxu0 0
      %653 = vmatpush2.bf16.msra.mxu0 0
      %654 = vmatprep.subr.bf16.mxu0 0
      %655 = vmatpush2.bf16.msra.mxu0 0
      %656 = vmatprep.subr.bf16.mxu0 0
      %657 = vmatpush2.bf16.msra.mxu0 0
      %658 = vmatprep.subr.bf16.mxu0 0
      %659 = vmatpush2.bf16.msra.mxu0 0
      %660 = vmatprep.mubr.bf16.mxu0 0
      %661 = vmatmul.mubr.bf16.gmra.mxu0 %v623
      %v662 = vpop.f32.mrf.mxu0
      %v663 = vadd.f32 0.0, %v662
      %v664 = vpop.f32.mrf.mxu0
      %v665 = vpop.f32.mrf.mxu0
      %v666 = vadd.f32 0.0, %v665
      %v667 = vpop.f32.mrf.mxu0
      %668 = vmatprep.mubr.bf16.mxu0 0
      %669 = vmatmul.mubr.bf16.gmra.mxu0 %v626
      %v670 = vpop.f32.mrf.mxu0
      %v671 = vadd.f32 0.0, %v670
      %v672 = vpop.f32.mrf.mxu0
      %v673 = vpop.f32.mrf.mxu0
      %v674 = vadd.f32 0.0, %v673
      %v675 = vpop.f32.mrf.mxu0
      %676 = vdwg.mxu0
      %v677 = vpack.c.bf16 %v666, %v663
      %v678 = vpack.c.bf16 %v674, %v671
      %v681 = vunpack.c.l.b16 %v677
      %v682 = vunpack.c.h.b16 %v677
      %v683 = vunpack.c.l.b16 %v678
      %v684 = vunpack.c.h.b16 %v678
      %v685 = vpack.c.b16 %v681, %v681
      %v686 = vpack.c.b16 %v682, %v682
      %v687 = vpack.c.b16 %v683, %v683
      %v688 = vpack.c.b16 %v684, %v684
      %693 = vst [vmem:[%s466] sm:$0xf] %v685
      %694 = vst [vmem:[%s466 + $0x4] sm:$0xf] %v686
      %695 = vst [vmem:[%s466 + $0x8] sm:$0xf] %v687
      %696 = vst [vmem:[%s466 + $0xc] sm:$0xf] %v688
      %697 = vadd.xlane.f32.xlu0 %v663
      %v698 = vpop.xlane.xlu0 %697
      %699 = vadd.xlane.f32.xlu0 %v666
      %v700 = vpop.xlane.xlu0 %699
      %701 = vadd.xlane.f32.xlu0 %v671
      %v702 = vpop.xlane.xlu0 %701
      %703 = vadd.xlane.f32.xlu0 %v674
      %v704 = vpop.xlane.xlu0 %703
      %705 = vst.msk [vmem:[%s479] sm:$0xff] %vm536, %v698
      %706 = vst.msk [vmem:[%s479 + $0x8] sm:$0xff] %vm536, %v700
      %707 = vst.msk [vmem:[%s479 + $0x10] sm:$0xff] %vm536, %v702
      %708 = vst.msk [vmem:[%s479 + $0x18] sm:$0xff] %vm536, %v704
      %v709 = vmul.f32 %v663, %v663
      %v710 = vmul.f32 %v666, %v666
      %v711 = vmul.f32 %v671, %v671
      %v712 = vmul.f32 %v674, %v674
      %713 = vadd.xlane.f32.xlu0 %v709
      %v714 = vpop.xlane.xlu0 %713
      %715 = vadd.xlane.f32.xlu0 %v710
      %v716 = vpop.xlane.xlu0 %715
      %717 = vadd.xlane.f32.xlu0 %v711
      %v718 = vpop.xlane.xlu0 %717
      %719 = vadd.xlane.f32.xlu0 %v712
      %v720 = vpop.xlane.xlu0 %719
      %721 = vst.msk [vmem:[%s479] sm:$0xff] %vm541, %v714
      %722 = vst.msk [vmem:[%s479 + $0x8] sm:$0xff] %vm541, %v716
      %723 = vst.msk [vmem:[%s479 + $0x10] sm:$0xff] %vm541, %v718
      %724 = vst.msk [vmem:[%s479 + $0x18] sm:$0xff] %vm541, %v720
      %p725 = scmp.lt.s32.totalorder %s23, 1
      %s726 = scalar_select %p725, %s23, 1
      %s727 = smul.addr %s726, 4
      %s728 = scalar_lea.vmem %s6, %s727
      %p729 = scmp.lt.s32.totalorder %s23, 1
      %s730 = scalar_select %p729, %s23, 1
      %s731 = smul.addr %s730, 4
      %s732 = scalar_lea.vmem %s7, %s731
      %p733 = scmp.lt.s32.totalorder %s23, 1
      %s734 = scalar_select %p733, %s23, 1
      %s735 = smul.addr %s734, 4
      %s736 = smul.addr %s735, 4
      %s737 = scalar_lea.vmem %s8, %s736
      %p738 = scmp.lt.s32.totalorder %s23, 1
      %s739 = scalar_select %p738, %s23, 1
      %s740 = smul.addr %s739, 8
      %s741 = scalar_lea.vmem %s9, %s740
      %p742 = scmp.lt.s32.totalorder %s23, 1
      %s743 = scalar_select %p742, %s23, 1
      %s744 = smul.addr %s743, 8
      %s745 = scalar_lea.vmem %s10, %s744
      %p746 = scmp.lt.s32.totalorder %s23, 1
      %s747 = scalar_select %p746, %s23, 1
      %s748 = smul.addr %s747, 4
      %s749 = smul.addr %s748, 8
      %s750 = scalar_lea.vmem %s11, %s749
      // Predicated region
      $region45: #{cci_layer_forward.3} parent=43 // pred_check
        %p751 = pneg %p182
      $region46: #{cci_layer_forward.3} parent=43 // pred_check_branch
        %753 = sbr.rel (%p751) target = $region48
      $region47: #{cci_layer_forward.3} parent=43 // pred_region
        _
      $region48: #{cci_layer_forward.3} parent=43 // pred_fallthru
        _
      // Predicated region
      $region49: #{cci_layer_forward.3} parent=43 // pred_check
        %p754 = pneg %p208
      $region50: #{cci_layer_forward.3} parent=43 // pred_check_branch
        %756 = sbr.rel (%p754) target = $region52
      $region51: #{cci_layer_forward.3} parent=43 // pred_region
        _
      $region52: #{cci_layer_forward.3} parent=43 // pred_fallthru
        _
      // Predicated region
      $region53: #{cci_layer_forward.3} parent=43 // pred_check
        %p757 = pneg %p234
      $region54: #{cci_layer_forward.3} parent=43 // pred_check_branch
        %759 = sbr.rel (%p757) target = $region56
      $region55: #{cci_layer_forward.3} parent=43 // pred_region
        _
      $region56: #{cci_layer_forward.3} parent=43 // pred_fallthru
        _
      // Predicated region
      $region57: #{cci_layer_forward.3} parent=43 // pred_check
        %p760 = pneg %p260
      $region58: #{cci_layer_forward.3} parent=43 // pred_check_branch
        %762 = sbr.rel (%p760) target = $region60
      $region59: #{cci_layer_forward.3} parent=43 // pred_region
        _
      $region60: #{cci_layer_forward.3} parent=43 // pred_fallthru
        _
      // Predicated region
      $region61: #{cci_layer_forward.3} parent=43 // pred_check
        %p763 = pneg %p286
      $region62: #{cci_layer_forward.3} parent=43 // pred_check_branch
        %765 = sbr.rel (%p763) target = $region64
      $region63: #{cci_layer_forward.3} parent=43 // pred_region
        _
      $region64: #{cci_layer_forward.3} parent=43 // pred_fallthru
        _
      // Predicated region
      $region65: #{cci_layer_forward.3} parent=43 // pred_check
        %p766 = pneg %p312
      $region66: #{cci_layer_forward.3} parent=43 // pred_check_branch
        %768 = sbr.rel (%p766) target = $region68
      $region67: #{cci_layer_forward.3} parent=43 // pred_region
        _
      $region68: #{cci_layer_forward.3} parent=43 // pred_fallthru
        _
    $region44: #{cci_layer_forward.3} parent=5 // pred_fallthru
      _
    %p769 = scmp.le.s32.totalorder 2, %s18
    // Predicated region
    $region69: #{cci_layer_forward.3} parent=5 // pred_check
      %p770 = pneg %p769
    $region70: #{cci_layer_forward.3} parent=5 // pred_check_branch
      %772 = sbr.rel (%p770) target = $region72
    $region71: #{cci_layer_forward.3} parent=5 // pred_region
      %s773 = ssub.s32 %s18, 2
      // Predicated region
      $region73: #{cci_layer_forward.3} parent=71 // pred_check
        %p774 = pneg %p188
      $region74: #{cci_layer_forward.3} parent=71 // pred_check_branch
        %776 = sbr.rel (%p774) target = $region76
      $region75: #{cci_layer_forward.3} parent=71 // pred_region
        %p777 = scmp.lt.s32.totalorder %s24, 1
        %s778 = scalar_select %p777, %s24, 1
        %s779 = smul.addr %s778, 4
        %s780 = scalar_lea.vmem %s6, %s779
      $region76: #{cci_layer_forward.3} parent=71 // pred_fallthru
        _
      // Predicated region
      $region77: #{cci_layer_forward.3} parent=71 // pred_check
        %p781 = pneg %p214
      $region78: #{cci_layer_forward.3} parent=71 // pred_check_branch
        %783 = sbr.rel (%p781) target = $region80
      $region79: #{cci_layer_forward.3} parent=71 // pred_region
        %p784 = scmp.lt.s32.totalorder %s24, 1
        %s785 = scalar_select %p784, %s24, 1
        %s786 = smul.addr %s785, 4
        %s787 = scalar_lea.vmem %s7, %s786
      $region80: #{cci_layer_forward.3} parent=71 // pred_fallthru
        _
      // Predicated region
      $region81: #{cci_layer_forward.3} parent=71 // pred_check
        %p788 = pneg %p240
      $region82: #{cci_layer_forward.3} parent=71 // pred_check_branch
        %790 = sbr.rel (%p788) target = $region84
      $region83: #{cci_layer_forward.3} parent=71 // pred_region
        %p791 = scmp.lt.s32.totalorder %s24, 1
        %s792 = scalar_select %p791, %s24, 1
        %s793 = smul.addr %s792, 4
        %s794 = smul.addr %s793, 4
        %s795 = scalar_lea.vmem %s8, %s794
      $region84: #{cci_layer_forward.3} parent=71 // pred_fallthru
        _
      // Predicated region
      $region85: #{cci_layer_forward.3} parent=71 // pred_check
        %p796 = pneg %p266
      $region86: #{cci_layer_forward.3} parent=71 // pred_check_branch
        %798 = sbr.rel (%p796) target = $region88
      $region87: #{cci_layer_forward.3} parent=71 // pred_region
        %p799 = scmp.lt.s32.totalorder %s24, 1
        %s800 = scalar_select %p799, %s24, 1
        %s801 = smul.addr %s800, 8
        %s802 = scalar_lea.vmem %s9, %s801
      $region88: #{cci_layer_forward.3} parent=71 // pred_fallthru
        _
      // Predicated region
      $region89: #{cci_layer_forward.3} parent=71 // pred_check
        %p803 = pneg %p292
      $region90: #{cci_layer_forward.3} parent=71 // pred_check_branch
        %805 = sbr.rel (%p803) target = $region92
      $region91: #{cci_layer_forward.3} parent=71 // pred_region
        %p806 = scmp.lt.s32.totalorder %s24, 1
        %s807 = scalar_select %p806, %s24, 1
        %s808 = smul.addr %s807, 8
        %s809 = scalar_lea.vmem %s10, %s808
      $region92: #{cci_layer_forward.3} parent=71 // pred_fallthru
        _
      // Predicated region
      $region93: #{cci_layer_forward.3} parent=71 // pred_check
        %p810 = pneg %p318
      $region94: #{cci_layer_forward.3} parent=71 // pred_check_branch
        %812 = sbr.rel (%p810) target = $region96
      $region95: #{cci_layer_forward.3} parent=71 // pred_region
        %p813 = scmp.lt.s32.totalorder %s24, 1
        %s814 = scalar_select %p813, %s24, 1
        %s815 = smul.addr %s814, 4
        %s816 = smul.addr %s815, 8
        %s817 = scalar_lea.vmem %s11, %s816
      $region96: #{cci_layer_forward.3} parent=71 // pred_fallthru
        _
    $region72: #{cci_layer_forward.3} parent=5 // pred_fallthru
      _
  $region6: #{cci_layer_forward.3} parent=0 // loop_footer
    %s22 = sadd.s32 1, %s18
  $region7: #{cci_layer_forward.3} parent=0 // loop_footer_branch
    %17 = sbr.rel target = $region3
  $region8: #{cci_layer_forward.3} parent=0 // loop_exit
    _

// kernel: cci_layer_forward.5
$region0: #{cci_layer_forward.5}
  #allocation0 [shape = 'u32[]', space=smem, size = 0x4, offset = 0x4, fixed_abs, tag = 'smem constant byte address 0x4 - core index']
  #allocation1 [shape = 'u32[144,128]{1,0:T(1,128)}', space=vmem, size = 0x12000, scoped, tag = 'internal scratch']
  #allocation2 [shape = 'f32[1,1]{1,0:T(1,128)S(6)}', space=smem, size = 0x200, scoped, tag = 'scoped memory for cci_layer_forward.5']
  %s0 = inlined_call_operand.vmem [shape: f32[2,32,128], index: 0, kind: input, shape index: {}, may-alias: {0,5}]
  %s1 = inlined_call_operand.vmem [shape: bf16[2,32,128], index: 1, kind: input, shape index: {}]
  %s2 = inlined_call_operand.vmem [shape: f32[32,1], index: 2, kind: input, shape index: {}]
  %s3 = inlined_call_operand.vmem [shape: f32[32,1], index: 3, kind: input, shape index: {}]
  %s4 = inlined_call_operand.<no memory space> [shape: f32[1,1], index: 4, kind: input, shape index: {}]
  %s5 = inlined_call_operand.vmem [shape: f32[2,32,128], index: 5, kind: output, shape index: {}, may-alias: {0,5}]
  %s6 = sld [smem:[#allocation0]]
  $region53: #{cci_layer_forward.5} parent=0
    _
  %s8 = ssub.s32 1, %s6
  %s9 = scalar_select 0, %s8, %s6
  %10 = sst [smem:[#allocation2]] %s4
  loop: start=0, step=1, limit=4
  $region2: #{cci_layer_forward.5} parent=0 // loop_pre_header
    _
  $region3: #{cci_layer_forward.5} parent=0 // loop_header
    %s12 = sphi 0, %s16
    %p13 = scmp.ge.s32.totalorder %s12, 4
    %s22 = sphi 0, %s24
    %s25 = sphi 0, %s22
    %s26 = sphi 0, %s25
    %s42 = sphi 0, %s26
    %s48 = sphi 0, %s50
    %s51 = sphi 0, %s48
    %s52 = sphi 0, %s51
    %s68 = sphi 0, %s52
    %s72 = sphi 0, %s72
    %s74 = sphi 0, %s72
    %s75 = sphi 0, %s74
    %s89 = sphi 0, %s75
    %s93 = sphi 0, %s93
    %s95 = sphi 0, %s93
    %s96 = sphi 0, %s95
    %s110 = sphi 0, %s96
    %s114 = sphi 0, %s114
    %s116 = sphi 0, %s114
    %s117 = sphi 0, %s116
    %s131 = sphi 0, %s117
    %s137 = sphi 0, %s139
    %s140 = sphi 0, %s137
    %s141 = sphi 0, %s140
    %s157 = sphi 0, %s141
  $region4: #{cci_layer_forward.5} parent=0 // loop_header_branch
    %15 = sbr.rel (%p13) target = $region8
  $region5: #{cci_layer_forward.5} parent=0 // loop_body
    %s17 = ssub.s32 %s12, 1
    %s18 = ssub.s32 %s12, 2
    %s19 = sadd.s32 %s12, 1
    %s20 = ssub.s32 %s12, %s19
    %p21 = scmp.eq.s32.totalorder %s20, 0
    %s23 = sadd.s32 %s22, 1
    %s24 = scalar_select %p21, %s22, %s23
    %p27 = pneg %p21
    %p28 = scmp.eq.s32.totalorder %s12, 1
    %p29 = por %p27, %p28
    %p30 = scmp.ne.s32.totalorder %s22, %s25
    %p31 = scmp.eq.s32.totalorder %s12, 0
    %p32 = por %p30, %p31
    %p33 = scmp.ne.s32.totalorder %s22, %s25
    %p34 = scmp.eq.s32.totalorder %s17, 1
    %p35 = por %p33, %p34
    %p36 = scmp.ne.s32.totalorder %s25, %s26
    %p37 = scmp.eq.s32.totalorder %s17, 0
    %p38 = por %p36, %p37
    %p39 = scmp.ne.s32.totalorder %s25, %s26
    %p40 = scmp.eq.s32.totalorder %s18, 1
    %p41 = por %p39, %p40
    %p43 = scmp.ne.s32.totalorder %s26, %s42
    %p44 = scmp.eq.s32.totalorder %s18, 0
    %p45 = por %p43, %p44
    %s46 = ssub.s32 %s12, %s19
    %p47 = scmp.eq.s32.totalorder %s46, 0
    %s49 = sadd.s32 %s48, 1
    %s50 = scalar_select %p47, %s48, %s49
    %p53 = pneg %p47
    %p54 = scmp.eq.s32.totalorder %s12, 1
    %p55 = por %p53, %p54
    %p56 = scmp.ne.s32.totalorder %s48, %s51
    %p57 = scmp.eq.s32.totalorder %s12, 0
    %p58 = por %p56, %p57
    %p59 = scmp.ne.s32.totalorder %s48, %s51
    %p60 = scmp.eq.s32.totalorder %s17, 1
    %p61 = por %p59, %p60
    %p62 = scmp.ne.s32.totalorder %s51, %s52
    %p63 = scmp.eq.s32.totalorder %s17, 0
    %p64 = por %p62, %p63
    %p65 = scmp.ne.s32.totalorder %s51, %s52
    %p66 = scmp.eq.s32.totalorder %s18, 1
    %p67 = por %p65, %p66
    %p69 = scmp.ne.s32.totalorder %s52, %s68
    %p70 = scmp.eq.s32.totalorder %s18, 0
    %p71 = por %p69, %p70
    %s73 = sadd.s32 %s72, 1
    %p76 = scmp.eq.s32.totalorder %s12, 1
    %p77 = scmp.ne.s32.totalorder %s72, %s74
    %p78 = scmp.eq.s32.totalorder %s12, 0
    %p79 = por %p77, %p78
    %p80 = scmp.ne.s32.totalorder %s72, %s74
    %p81 = scmp.eq.s32.totalorder %s17, 1
    %p82 = por %p80, %p81
    %p83 = scmp.ne.s32.totalorder %s74, %s75
    %p84 = scmp.eq.s32.totalorder %s17, 0
    %p85 = por %p83, %p84
    %p86 = scmp.ne.s32.totalorder %s74, %s75
    %p87 = scmp.eq.s32.totalorder %s18, 1
    %p88 = por %p86, %p87
    %p90 = scmp.ne.s32.totalorder %s75, %s89
    %p91 = scmp.eq.s32.totalorder %s18, 0
    %p92 = por %p90, %p91
    %s94 = sadd.s32 %s93, 1
    %p97 = scmp.eq.s32.totalorder %s12, 1
    %p98 = scmp.ne.s32.totalorder %s93, %s95
    %p99 = scmp.eq.s32.totalorder %s12, 0
    %p100 = por %p98, %p99
    %p101 = scmp.ne.s32.totalorder %s93, %s95
    %p102 = scmp.eq.s32.totalorder %s17, 1
    %p103 = por %p101, %p102
    %p104 = scmp.ne.s32.totalorder %s95, %s96
    %p105 = scmp.eq.s32.totalorder %s17, 0
    %p106 = por %p104, %p105
    %p107 = scmp.ne.s32.totalorder %s95, %s96
    %p108 = scmp.eq.s32.totalorder %s18, 1
    %p109 = por %p107, %p108
    %p111 = scmp.ne.s32.totalorder %s96, %s110
    %p112 = scmp.eq.s32.totalorder %s18, 0
    %p113 = por %p111, %p112
    %s115 = sadd.s32 %s114, 1
    %p118 = scmp.eq.s32.totalorder %s12, 1
    %p119 = scmp.ne.s32.totalorder %s114, %s116
    %p120 = scmp.eq.s32.totalorder %s12, 0
    %p121 = por %p119, %p120
    %p122 = scmp.ne.s32.totalorder %s114, %s116
    %p123 = scmp.eq.s32.totalorder %s17, 1
    %p124 = por %p122, %p123
    %p125 = scmp.ne.s32.totalorder %s116, %s117
    %p126 = scmp.eq.s32.totalorder %s17, 0
    %p127 = por %p125, %p126
    %p128 = scmp.ne.s32.totalorder %s116, %s117
    %p129 = scmp.eq.s32.totalorder %s18, 1
    %p130 = por %p128, %p129
    %p132 = scmp.ne.s32.totalorder %s117, %s131
    %p133 = scmp.eq.s32.totalorder %s18, 0
    %p134 = por %p132, %p133
    %s135 = ssub.s32 %s12, %s19
    %p136 = scmp.eq.s32.totalorder %s135, 0
    %s138 = sadd.s32 %s137, 1
    %s139 = scalar_select %p136, %s137, %s138
    %p142 = pneg %p136
    %p143 = scmp.eq.s32.totalorder %s12, 1
    %p144 = por %p142, %p143
    %p145 = scmp.ne.s32.totalorder %s137, %s140
    %p146 = scmp.eq.s32.totalorder %s12, 0
    %p147 = por %p145, %p146
    %p148 = scmp.ne.s32.totalorder %s137, %s140
    %p149 = scmp.eq.s32.totalorder %s17, 1
    %p150 = por %p148, %p149
    %p151 = scmp.ne.s32.totalorder %s140, %s141
    %p152 = scmp.eq.s32.totalorder %s17, 0
    %p153 = por %p151, %p152
    %p154 = scmp.ne.s32.totalorder %s140, %s141
    %p155 = scmp.eq.s32.totalorder %s18, 1
    %p156 = por %p154, %p155
    %p158 = scmp.ne.s32.totalorder %s141, %s157
    %p159 = scmp.eq.s32.totalorder %s18, 0
    %p160 = por %p158, %p159
    %p161 = scmp.le.s32.totalorder 1, %s12
    %p162 = scmp.lt.s32.totalorder %s12, 3
    %p163 = pnand %p161, %p162
    %p164 = pneg %p163
    // Predicated region
    $region9: #{cci_layer_forward.5} parent=5 // pred_check
      _
    $region10: #{cci_layer_forward.5} parent=5 // pred_check_branch
      %166 = sbr.rel (%p163) target = $region12
    $region11: #{cci_layer_forward.5} parent=5 // pred_region
      %s167 = ssub.s32 %s12, 1
      // Predicated region
      $region13: #{cci_layer_forward.5} parent=11 // pred_check
        %p168 = pneg %p85
      $region14: #{cci_layer_forward.5} parent=11 // pred_check_branch
        %170 = sbr.rel (%p168) target = $region16
      $region15: #{cci_layer_forward.5} parent=11 // pred_region
        _
      $region16: #{cci_layer_forward.5} parent=11 // pred_fallthru
        _
      // Predicated region
      $region17: #{cci_layer_forward.5} parent=11 // pred_check
        %p171 = pneg %p106
      $region18: #{cci_layer_forward.5} parent=11 // pred_check_branch
        %173 = sbr.rel (%p171) target = $region20
      $region19: #{cci_layer_forward.5} parent=11 // pred_region
        _
      $region20: #{cci_layer_forward.5} parent=11 // pred_fallthru
        _
      // Predicated region
      $region21: #{cci_layer_forward.5} parent=11 // pred_check
        %p174 = pneg %p127
      $region22: #{cci_layer_forward.5} parent=11 // pred_check_branch
        %176 = sbr.rel (%p174) target = $region24
      $region23: #{cci_layer_forward.5} parent=11 // pred_region
        _
      $region24: #{cci_layer_forward.5} parent=11 // pred_fallthru
        _
    $region12: #{cci_layer_forward.5} parent=5 // pred_fallthru
      _
    %p177 = scmp.lt.s32.totalorder %s12, 2
    // Predicated region
    $region25: #{cci_layer_forward.5} parent=5 // pred_check
      %p178 = pneg %p177
    $region26: #{cci_layer_forward.5} parent=5 // pred_check_branch
      %180 = sbr.rel (%p178) target = $region28
    $region27: #{cci_layer_forward.5} parent=5 // pred_region
      // Predicated region
      $region29: #{cci_layer_forward.5} parent=27 // pred_check
        %p181 = pneg %p32
      $region30: #{cci_layer_forward.5} parent=27 // pred_check_branch
        %183 = sbr.rel (%p181) target = $region32
      $region31: #{cci_layer_forward.5} parent=27 // pred_region
        %p184 = scmp.lt.s32.totalorder %s12, 1
        %s185 = scalar_select %p184, %s12, 1
        %s186 = smul.addr %s185, 4
        %s187 = smul.addr %s186, 8
        %s188 = scalar_lea.vmem %s0, %s187
      $region32: #{cci_layer_forward.5} parent=27 // pred_fallthru
        _
      // Predicated region
      $region33: #{cci_layer_forward.5} parent=27 // pred_check
        %p189 = pneg %p58
      $region34: #{cci_layer_forward.5} parent=27 // pred_check_branch
        %191 = sbr.rel (%p189) target = $region36
      $region35: #{cci_layer_forward.5} parent=27 // pred_region
        %p192 = scmp.lt.s32.totalorder %s12, 1
        %s193 = scalar_select %p192, %s12, 1
        %s194 = smul.addr %s193, 4
        %s195 = smul.addr %s194, 4
        %s196 = scalar_lea.vmem %s1, %s195
      $region36: #{cci_layer_forward.5} parent=27 // pred_fallthru
        _
    $region28: #{cci_layer_forward.5} parent=5 // pred_fallthru
      _
    %p197 = scmp.le.s32.totalorder 1, %s12
    %p198 = scmp.lt.s32.totalorder %s12, 3
    %p199 = pnand %p197, %p198
    %p200 = pneg %p199
    // Predicated region
    $region37: #{cci_layer_forward.5} parent=5 // pred_check
      _
    $region38: #{cci_layer_forward.5} parent=5 // pred_check_branch
      %202 = sbr.rel (%p199) target = $region40
    $region39: #{cci_layer_forward.5} parent=5 // pred_region
      %s203 = ssub.s32 %s12, 1
      %p204 = scmp.lt.s32.totalorder %s17, 1
      %s205 = scalar_select %p204, %s17, 1
      %s206 = smul.addr %s205, 4
      %s207 = smul.addr %s206, 8
      %s208 = scalar_lea.vmem %s0, %s207
      %p209 = pneg %p38
      %p210 = pneg %p35
      %p211 = scmp.lt.s32.totalorder %s17, 1
      %s212 = scalar_select %p211, %s17, 1
      %s213 = smul.addr %s212, 4
      %s214 = smul.addr %s213, 4
      %s215 = scalar_lea.vmem %s1, %s214
      %p216 = pneg %p64
      %p217 = pneg %p61
      %p218 = pneg %p85
      %p219 = pneg %p82
      %p220 = pneg %p106
      %p221 = pneg %p103
      %p222 = pneg %p127
      %p223 = pneg %p124
      %p224 = pneg %p153
      %p225 = pneg %p150
      %p226 = scmp.lt.s32.totalorder %s17, 1
      %s227 = scalar_select %p226, %s17, 1
      %s228 = smul.addr %s227, 4
      %s229 = smul.addr %s228, 8
      %s230 = scalar_lea.vmem %s5, %s229
      %p231 = scmp.lt.s32.totalorder %s17, 1
      %s232 = scalar_select %p231, %s17, 1
      %s233 = smul.addr %s232, 4
      %s234 = smul.addr %s233, 8
      %s235 = scalar_lea.vmem %s0, %s234
      %p236 = scmp.lt.s32.totalorder %s17, 1
      %s237 = scalar_select %p236, %s17, 1
      %s238 = smul.addr %s237, 4
      %s239 = smul.addr %s238, 4
      %s240 = scalar_lea.vmem %s1, %s239
      %p241 = scmp.lt.s32.totalorder %s17, 1
      %s242 = scalar_select %p241, %s17, 1
      %s243 = smul.addr %s242, 4
      %s244 = smul.addr %s243, 8
      %s245 = scalar_lea.vmem %s5, %s244
      %v246 = vld [vmem:[%s240] sm:$0xf]
      %v247 = vld [vmem:[%s240 + $0x4] sm:$0xf]
      %v248 = vld [vmem:[%s240 + $0x8] sm:$0xf]
      %v249 = vld [vmem:[%s240 + $0xc] sm:$0xf]
      %v250 = vunpack.c.l.bf16 %v246
      %v251 = vunpack.c.l.bf16 %v247
      %v252 = vunpack.c.l.bf16 %v248
      %v253 = vunpack.c.l.bf16 %v249
      %v254 = vld [vmem:[%s2] sm:$0xff]
      %v255 = vld [vmem:[%s2 + $0x8] sm:$0xff]
      %v256 = vld [vmem:[%s2 + $0x10] sm:$0xff]
      %v257 = vld [vmem:[%s2 + $0x18] sm:$0xff]
      %259 = vset.pattern.permute.xlu0 0
      %260 = vperm.xlu0 %259, %v254
      %v261 = vpop.permute.xlu0 %260
      %264 = vset.pattern.permute.xlu0 0
      %265 = vperm.xlu0 %264, %v255
      %v266 = vpop.permute.xlu0 %265
      %269 = vset.pattern.permute.xlu0 0
      %270 = vperm.xlu0 %269, %v256
      %v271 = vpop.permute.xlu0 %270
      %274 = vset.pattern.permute.xlu0 0
      %275 = vperm.xlu0 %274, %v257
      %v276 = vpop.permute.xlu0 %275
      %v278 = vmul.f32 %v250, %v261
      %v279 = vmul.f32 %v251, %v266
      %v280 = vmul.f32 %v252, %v271
      %v281 = vmul.f32 %v253, %v276
      %v282 = vld [vmem:[%s3] sm:$0xff]
      %v283 = vld [vmem:[%s3 + $0x8] sm:$0xff]
      %v284 = vld [vmem:[%s3 + $0x10] sm:$0xff]
      %v285 = vld [vmem:[%s3 + $0x18] sm:$0xff]
      %287 = vset.pattern.permute.xlu0 0
      %288 = vperm.xlu0 %287, %v282
      %v289 = vpop.permute.xlu0 %288
      %292 = vset.pattern.permute.xlu0 0
      %293 = vperm.xlu0 %292, %v283
      %v294 = vpop.permute.xlu0 %293
      %297 = vset.pattern.permute.xlu0 0
      %298 = vperm.xlu0 %297, %v284
      %v299 = vpop.permute.xlu0 %298
      %302 = vset.pattern.permute.xlu0 0
      %303 = vperm.xlu0 %302, %v285
      %v304 = vpop.permute.xlu0 %303
      %v306 = vadd.f32 %v278, %v289
      %v307 = vadd.f32 %v279, %v294
      %v308 = vadd.f32 %v280, %v299
      %v309 = vadd.f32 %v281, %v304
      %v310 = vmax.f32 %v306, 0.0
      %v311 = vmax.f32 %v307, 0.0
      %v312 = vmax.f32 %v308, 0.0
      %v313 = vmax.f32 %v309, 0.0
      %v314 = vld [vmem:[%s235] sm:$0xff]
      %v315 = vld [vmem:[%s235 + $0x8] sm:$0xff]
      %v316 = vld [vmem:[%s235 + $0x10] sm:$0xff]
      %v317 = vld [vmem:[%s235 + $0x18] sm:$0xff]
      %s318 = sld [smem:[#allocation2]]
      %v319 = vstv %s318
      %v320 = vmul.f32 %v319, %v310
      %v321 = vmul.f32 %v319, %v311
      %v322 = vmul.f32 %v319, %v312
      %v323 = vmul.f32 %v319, %v313
      %v324 = vadd.f32 %v314, %v320
      %v325 = vadd.f32 %v315, %v321
      %v326 = vadd.f32 %v316, %v322
      %v327 = vadd.f32 %v317, %v323
      %328 = vst [vmem:[%s245] sm:$0xff] %v324
      %329 = vst [vmem:[%s245 + $0x8] sm:$0xff] %v325
      %330 = vst [vmem:[%s245 + $0x10] sm:$0xff] %v326
      %331 = vst [vmem:[%s245 + $0x18] sm:$0xff] %v327
      %p332 = scmp.lt.s32.totalorder %s17, 1
      %s333 = scalar_select %p332, %s17, 1
      %s334 = smul.addr %s333, 4
      %s335 = smul.addr %s334, 8
      %s336 = scalar_lea.vmem %s5, %s335
      // Predicated region
      $region41: #{cci_layer_forward.5} parent=39 // pred_check
        %p337 = pneg %p150
      $region42: #{cci_layer_forward.5} parent=39 // pred_check_branch
        %339 = sbr.rel (%p337) target = $region44
      $region43: #{cci_layer_forward.5} parent=39 // pred_region
        _
      $region44: #{cci_layer_forward.5} parent=39 // pred_fallthru
        _
    $region40: #{cci_layer_forward.5} parent=5 // pred_fallthru
      _
    %p340 = scmp.le.s32.totalorder 2, %s12
    // Predicated region
    $region45: #{cci_layer_forward.5} parent=5 // pred_check
      %p341 = pneg %p340
    $region46: #{cci_layer_forward.5} parent=5 // pred_check_branch
      %343 = sbr.rel (%p341) target = $region48
    $region47: #{cci_layer_forward.5} parent=5 // pred_region
      %s344 = ssub.s32 %s12, 2
      // Predicated region
      $region49: #{cci_layer_forward.5} parent=47 // pred_check
        %p345 = pneg %p156
      $region50: #{cci_layer_forward.5} parent=47 // pred_check_branch
        %347 = sbr.rel (%p345) target = $region52
      $region51: #{cci_layer_forward.5} parent=47 // pred_region
        %p348 = scmp.lt.s32.totalorder %s18, 1
        %s349 = scalar_select %p348, %s18, 1
        %s350 = smul.addr %s349, 4
        %s351 = smul.addr %s350, 8
        %s352 = scalar_lea.vmem %s5, %s351
      $region52: #{cci_layer_forward.5} parent=47 // pred_fallthru
        _
    $region48: #{cci_layer_forward.5} parent=5 // pred_fallthru
      _
  $region6: #{cci_layer_forward.5} parent=0 // loop_footer
    %s16 = sadd.s32 1, %s12
  $region7: #{cci_layer_forward.5} parent=0 // loop_footer_branch
    %11 = sbr.rel target = $region3
  $region8: #{cci_layer_forward.5} parent=0 // loop_exit
    _

// kernel: cci_layer_forward.4
$region0: #{cci_layer_forward.4}
  #allocation0 [shape = 'u32[]', space=smem, size = 0x4, offset = 0x4, fixed_abs, tag = 'smem constant byte address 0x4 - core index']
  #allocation1 [shape = 'u32[144,128]{1,0:T(1,128)}', space=vmem, size = 0x12000, scoped, tag = 'internal scratch']
  %s0 = inlined_call_operand.vmem [shape: bf16[2,8,128], index: 0, kind: input, shape index: {}]
  %s1 = inlined_call_operand.vmem [shape: bf16[2,8,128], index: 1, kind: input, shape index: {}]
  %s2 = inlined_call_operand.vmem [shape: bf16[2,32,128], index: 2, kind: input, shape index: {}]
  %s3 = inlined_call_operand.vmem [shape: f32[8,1], index: 3, kind: input, shape index: {}]
  %s4 = inlined_call_operand.vmem [shape: f32[8,1], index: 4, kind: input, shape index: {}]
  %s5 = inlined_call_operand.vmem [shape: f32[8,1], index: 5, kind: input, shape index: {}]
  %s6 = inlined_call_operand.vmem [shape: f32[8,1], index: 6, kind: input, shape index: {}]
  %s7 = inlined_call_operand.vmem [shape: f32[32,1], index: 7, kind: input, shape index: {}]
  %s8 = inlined_call_operand.vmem [shape: f32[32,1], index: 8, kind: input, shape index: {}]
  %s9 = inlined_call_operand.vmem [shape: bf16[32,32], index: 9, kind: input, shape index: {}]
  %s10 = inlined_call_operand.vmem [shape: bf16[2,32,128], index: 10, kind: output, shape index: {0}]
  %s11 = inlined_call_operand.vmem [shape: f32[2,1,32,2], index: 11, kind: output, shape index: {1}]
  %12 = xla_tuple %s10, %s11
  %s13 = sld [smem:[#allocation0]]
  $region81: #{cci_layer_forward.4} parent=0
    _
  %s15 = ssub.s32 1, %s13
  %s16 = scalar_select 0, %s15, %s13
  loop: start=0, step=1, limit=4
  $region2: #{cci_layer_forward.4} parent=0 // loop_pre_header
    _
  $region3: #{cci_layer_forward.4} parent=0 // loop_header
    %s18 = sphi 0, %s22
    %p19 = scmp.ge.s32.totalorder %s18, 4
    %s25 = sphi 0, %s37
    %s26 = sphi 0, %s33
    %s27 = sphi 0, %s25
    %s28 = sphi 0, %s26
    %s29 = sphi 0, %s27
    %s30 = sphi 0, %s28
    %s42 = sphi 0, %s44
    %s45 = sphi 0, %s42
    %s46 = sphi 0, %s45
    %s62 = sphi 0, %s46
    %s68 = sphi 0, %s70
    %s71 = sphi 0, %s68
    %s72 = sphi 0, %s71
    %s88 = sphi 0, %s72
    %s94 = sphi 0, %s96
    %s97 = sphi 0, %s94
    %s98 = sphi 0, %s97
    %s114 = sphi 0, %s98
    %s118 = sphi 0, %s118
    %s120 = sphi 0, %s118
    %s121 = sphi 0, %s120
    %s135 = sphi 0, %s121
    %s139 = sphi 0, %s139
    %s141 = sphi 0, %s139
    %s142 = sphi 0, %s141
    %s156 = sphi 0, %s142
    %s160 = sphi 0, %s160
    %s162 = sphi 0, %s160
    %s163 = sphi 0, %s162
    %s177 = sphi 0, %s163
    %s181 = sphi 0, %s181
    %s183 = sphi 0, %s181
    %s184 = sphi 0, %s183
    %s198 = sphi 0, %s184
    %s202 = sphi 0, %s202
    %s204 = sphi 0, %s202
    %s205 = sphi 0, %s204
    %s219 = sphi 0, %s205
    %s223 = sphi 0, %s223
    %s225 = sphi 0, %s223
    %s226 = sphi 0, %s225
    %s240 = sphi 0, %s226
    %s244 = sphi 0, %s244
    %s246 = sphi 0, %s244
    %s247 = sphi 0, %s246
    %s261 = sphi 0, %s247
    %s269 = sphi 0, %s271
    %s272 = sphi 0, %s269
    %s273 = sphi 0, %s272
    %s289 = sphi 0, %s273
    %s297 = sphi 0, %s299
    %s300 = sphi 0, %s297
    %s301 = sphi 0, %s300
    %s317 = sphi 0, %s301
  $region4: #{cci_layer_forward.4} parent=0 // loop_header_branch
    %21 = sbr.rel (%p19) target = $region8
  $region5: #{cci_layer_forward.4} parent=0 // loop_body
    %s23 = ssub.s32 %s18, 1
    %s24 = ssub.s32 %s18, 2
    %s31 = sadd.s32 1, %s26
    %p32 = scmp.ge.s32.totalorder %s31, 1
    %s33 = scalar_select %p32, 0, %s31
    %s34 = sadd.s32 1, %s25
    %s35 = scalar_select %p32, %s34, %s25
    %p36 = scmp.ge.s32.totalorder %s35, 2
    %s37 = scalar_select %p36, 0, %s35
    %s38 = ssub.s32 %s25, %s37
    %s39 = ssub.s32 %s26, %s33
    %s40 = sor.u32 %s38, %s39
    %p41 = scmp.eq.s32.totalorder %s40, 0
    %s43 = sadd.s32 %s42, 1
    %s44 = scalar_select %p41, %s42, %s43
    %p47 = pneg %p41
    %p48 = scmp.eq.s32.totalorder %s18, 1
    %p49 = por %p47, %p48
    %p50 = scmp.ne.s32.totalorder %s42, %s45
    %p51 = scmp.eq.s32.totalorder %s18, 0
    %p52 = por %p50, %p51
    %p53 = scmp.ne.s32.totalorder %s42, %s45
    %p54 = scmp.eq.s32.totalorder %s23, 1
    %p55 = por %p53, %p54
    %p56 = scmp.ne.s32.totalorder %s45, %s46
    %p57 = scmp.eq.s32.totalorder %s23, 0
    %p58 = por %p56, %p57
    %p59 = scmp.ne.s32.totalorder %s45, %s46
    %p60 = scmp.eq.s32.totalorder %s24, 1
    %p61 = por %p59, %p60
    %p63 = scmp.ne.s32.totalorder %s46, %s62
    %p64 = scmp.eq.s32.totalorder %s24, 0
    %p65 = por %p63, %p64
    %s66 = ssub.s32 %s25, %s37
    %p67 = scmp.eq.s32.totalorder %s66, 0
    %s69 = sadd.s32 %s68, 1
    %s70 = scalar_select %p67, %s68, %s69
    %p73 = pneg %p67
    %p74 = scmp.eq.s32.totalorder %s18, 1
    %p75 = por %p73, %p74
    %p76 = scmp.ne.s32.totalorder %s68, %s71
    %p77 = scmp.eq.s32.totalorder %s18, 0
    %p78 = por %p76, %p77
    %p79 = scmp.ne.s32.totalorder %s68, %s71
    %p80 = scmp.eq.s32.totalorder %s23, 1
    %p81 = por %p79, %p80
    %p82 = scmp.ne.s32.totalorder %s71, %s72
    %p83 = scmp.eq.s32.totalorder %s23, 0
    %p84 = por %p82, %p83
    %p85 = scmp.ne.s32.totalorder %s71, %s72
    %p86 = scmp.eq.s32.totalorder %s24, 1
    %p87 = por %p85, %p86
    %p89 = scmp.ne.s32.totalorder %s72, %s88
    %p90 = scmp.eq.s32.totalorder %s24, 0
    %p91 = por %p89, %p90
    %s92 = ssub.s32 %s25, %s37
    %p93 = scmp.eq.s32.totalorder %s92, 0
    %s95 = sadd.s32 %s94, 1
    %s96 = scalar_select %p93, %s94, %s95
    %p99 = pneg %p93
    %p100 = scmp.eq.s32.totalorder %s18, 1
    %p101 = por %p99, %p100
    %p102 = scmp.ne.s32.totalorder %s94, %s97
    %p103 = scmp.eq.s32.totalorder %s18, 0
    %p104 = por %p102, %p103
    %p105 = scmp.ne.s32.totalorder %s94, %s97
    %p106 = scmp.eq.s32.totalorder %s23, 1
    %p107 = por %p105, %p106
    %p108 = scmp.ne.s32.totalorder %s97, %s98
    %p109 = scmp.eq.s32.totalorder %s23, 0
    %p110 = por %p108, %p109
    %p111 = scmp.ne.s32.totalorder %s97, %s98
    %p112 = scmp.eq.s32.totalorder %s24, 1
    %p113 = por %p111, %p112
    %p115 = scmp.ne.s32.totalorder %s98, %s114
    %p116 = scmp.eq.s32.totalorder %s24, 0
    %p117 = por %p115, %p116
    %s119 = sadd.s32 %s118, 1
    %p122 = scmp.eq.s32.totalorder %s18, 1
    %p123 = scmp.ne.s32.totalorder %s118, %s120
    %p124 = scmp.eq.s32.totalorder %s18, 0
    %p125 = por %p123, %p124
    %p126 = scmp.ne.s32.totalorder %s118, %s120
    %p127 = scmp.eq.s32.totalorder %s23, 1
    %p128 = por %p126, %p127
    %p129 = scmp.ne.s32.totalorder %s120, %s121
    %p130 = scmp.eq.s32.totalorder %s23, 0
    %p131 = por %p129, %p130
    %p132 = scmp.ne.s32.totalorder %s120, %s121
    %p133 = scmp.eq.s32.totalorder %s24, 1
    %p134 = por %p132, %p133
    %p136 = scmp.ne.s32.totalorder %s121, %s135
    %p137 = scmp.eq.s32.totalorder %s24, 0
    %p138 = por %p136, %p137
    %s140 = sadd.s32 %s139, 1
    %p143 = scmp.eq.s32.totalorder %s18, 1
    %p144 = scmp.ne.s32.totalorder %s139, %s141
    %p145 = scmp.eq.s32.totalorder %s18, 0
    %p146 = por %p144, %p145
    %p147 = scmp.ne.s32.totalorder %s139, %s141
    %p148 = scmp.eq.s32.totalorder %s23, 1
    %p149 = por %p147, %p148
    %p150 = scmp.ne.s32.totalorder %s141, %s142
    %p151 = scmp.eq.s32.totalorder %s23, 0
    %p152 = por %p150, %p151
    %p153 = scmp.ne.s32.totalorder %s141, %s142
    %p154 = scmp.eq.s32.totalorder %s24, 1
    %p155 = por %p153, %p154
    %p157 = scmp.ne.s32.totalorder %s142, %s156
    %p158 = scmp.eq.s32.totalorder %s24, 0
    %p159 = por %p157, %p158
    %s161 = sadd.s32 %s160, 1
    %p164 = scmp.eq.s32.totalorder %s18, 1
    %p165 = scmp.ne.s32.totalorder %s160, %s162
    %p166 = scmp.eq.s32.totalorder %s18, 0
    %p167 = por %p165, %p166
    %p168 = scmp.ne.s32.totalorder %s160, %s162
    %p169 = scmp.eq.s32.totalorder %s23, 1
    %p170 = por %p168, %p169
    %p171 = scmp.ne.s32.totalorder %s162, %s163
    %p172 = scmp.eq.s32.totalorder %s23, 0
    %p173 = por %p171, %p172
    %p174 = scmp.ne.s32.totalorder %s162, %s163
    %p175 = scmp.eq.s32.totalorder %s24, 1
    %p176 = por %p174, %p175
    %p178 = scmp.ne.s32.totalorder %s163, %s177
    %p179 = scmp.eq.s32.totalorder %s24, 0
    %p180 = por %p178, %p179
    %s182 = sadd.s32 %s181, 1
    %p185 = scmp.eq.s32.totalorder %s18, 1
    %p186 = scmp.ne.s32.totalorder %s181, %s183
    %p187 = scmp.eq.s32.totalorder %s18, 0
    %p188 = por %p186, %p187
    %p189 = scmp.ne.s32.totalorder %s181, %s183
    %p190 = scmp.eq.s32.totalorder %s23, 1
    %p191 = por %p189, %p190
    %p192 = scmp.ne.s32.totalorder %s183, %s184
    %p193 = scmp.eq.s32.totalorder %s23, 0
    %p194 = por %p192, %p193
    %p195 = scmp.ne.s32.totalorder %s183, %s184
    %p196 = scmp.eq.s32.totalorder %s24, 1
    %p197 = por %p195, %p196
    %p199 = scmp.ne.s32.totalorder %s184, %s198
    %p200 = scmp.eq.s32.totalorder %s24, 0
    %p201 = por %p199, %p200
    %s203 = sadd.s32 %s202, 1
    %p206 = scmp.eq.s32.totalorder %s18, 1
    %p207 = scmp.ne.s32.totalorder %s202, %s204
    %p208 = scmp.eq.s32.totalorder %s18, 0
    %p209 = por %p207, %p208
    %p210 = scmp.ne.s32.totalorder %s202, %s204
    %p211 = scmp.eq.s32.totalorder %s23, 1
    %p212 = por %p210, %p211
    %p213 = scmp.ne.s32.totalorder %s204, %s205
    %p214 = scmp.eq.s32.totalorder %s23, 0
    %p215 = por %p213, %p214
    %p216 = scmp.ne.s32.totalorder %s204, %s205
    %p217 = scmp.eq.s32.totalorder %s24, 1
    %p218 = por %p216, %p217
    %p220 = scmp.ne.s32.totalorder %s205, %s219
    %p221 = scmp.eq.s32.totalorder %s24, 0
    %p222 = por %p220, %p221
    %s224 = sadd.s32 %s223, 1
    %p227 = scmp.eq.s32.totalorder %s18, 1
    %p228 = scmp.ne.s32.totalorder %s223, %s225
    %p229 = scmp.eq.s32.totalorder %s18, 0
    %p230 = por %p228, %p229
    %p231 = scmp.ne.s32.totalorder %s223, %s225
    %p232 = scmp.eq.s32.totalorder %s23, 1
    %p233 = por %p231, %p232
    %p234 = scmp.ne.s32.totalorder %s225, %s226
    %p235 = scmp.eq.s32.totalorder %s23, 0
    %p236 = por %p234, %p235
    %p237 = scmp.ne.s32.totalorder %s225, %s226
    %p238 = scmp.eq.s32.totalorder %s24, 1
    %p239 = por %p237, %p238
    %p241 = scmp.ne.s32.totalorder %s226, %s240
    %p242 = scmp.eq.s32.totalorder %s24, 0
    %p243 = por %p241, %p242
    %s245 = sadd.s32 %s244, 1
    %p248 = scmp.eq.s32.totalorder %s18, 1
    %p249 = scmp.ne.s32.totalorder %s244, %s246
    %p250 = scmp.eq.s32.totalorder %s18, 0
    %p251 = por %p249, %p250
    %p252 = scmp.ne.s32.totalorder %s244, %s246
    %p253 = scmp.eq.s32.totalorder %s23, 1
    %p254 = por %p252, %p253
    %p255 = scmp.ne.s32.totalorder %s246, %s247
    %p256 = scmp.eq.s32.totalorder %s23, 0
    %p257 = por %p255, %p256
    %p258 = scmp.ne.s32.totalorder %s246, %s247
    %p259 = scmp.eq.s32.totalorder %s24, 1
    %p260 = por %p258, %p259
    %p262 = scmp.ne.s32.totalorder %s247, %s261
    %p263 = scmp.eq.s32.totalorder %s24, 0
    %p264 = por %p262, %p263
    %s265 = ssub.s32 %s25, %s37
    %s266 = ssub.s32 %s26, %s33
    %s267 = sor.u32 %s265, %s266
    %p268 = scmp.eq.s32.totalorder %s267, 0
    %s270 = sadd.s32 %s269, 1
    %s271 = scalar_select %p268, %s269, %s270
    %p274 = pneg %p268
    %p275 = scmp.eq.s32.totalorder %s18, 1
    %p276 = por %p274, %p275
    %p277 = scmp.ne.s32.totalorder %s269, %s272
    %p278 = scmp.eq.s32.totalorder %s18, 0
    %p279 = por %p277, %p278
    %p280 = scmp.ne.s32.totalorder %s269, %s272
    %p281 = scmp.eq.s32.totalorder %s23, 1
    %p282 = por %p280, %p281
    %p283 = scmp.ne.s32.totalorder %s272, %s273
    %p284 = scmp.eq.s32.totalorder %s23, 0
    %p285 = por %p283, %p284
    %p286 = scmp.ne.s32.totalorder %s272, %s273
    %p287 = scmp.eq.s32.totalorder %s24, 1
    %p288 = por %p286, %p287
    %p290 = scmp.ne.s32.totalorder %s273, %s289
    %p291 = scmp.eq.s32.totalorder %s24, 0
    %p292 = por %p290, %p291
    %s293 = ssub.s32 %s25, %s37
    %s294 = ssub.s32 %s26, %s33
    %s295 = sor.u32 %s293, %s294
    %p296 = scmp.eq.s32.totalorder %s295, 0
    %s298 = sadd.s32 %s297, 1
    %s299 = scalar_select %p296, %s297, %s298
    %p302 = pneg %p296
    %p303 = scmp.eq.s32.totalorder %s18, 1
    %p304 = por %p302, %p303
    %p305 = scmp.ne.s32.totalorder %s297, %s300
    %p306 = scmp.eq.s32.totalorder %s18, 0
    %p307 = por %p305, %p306
    %p308 = scmp.ne.s32.totalorder %s297, %s300
    %p309 = scmp.eq.s32.totalorder %s23, 1
    %p310 = por %p308, %p309
    %p311 = scmp.ne.s32.totalorder %s300, %s301
    %p312 = scmp.eq.s32.totalorder %s23, 0
    %p313 = por %p311, %p312
    %p314 = scmp.ne.s32.totalorder %s300, %s301
    %p315 = scmp.eq.s32.totalorder %s24, 1
    %p316 = por %p314, %p315
    %p318 = scmp.ne.s32.totalorder %s301, %s317
    %p319 = scmp.eq.s32.totalorder %s24, 0
    %p320 = por %p318, %p319
    %p321 = scmp.le.s32.totalorder 1, %s18
    %p322 = scmp.lt.s32.totalorder %s18, 3
    %p323 = pnand %p321, %p322
    %p324 = pneg %p323
    // Predicated region
    $region9: #{cci_layer_forward.4} parent=5 // pred_check
      _
    $region10: #{cci_layer_forward.4} parent=5 // pred_check_branch
      %326 = sbr.rel (%p323) target = $region12
    $region11: #{cci_layer_forward.4} parent=5 // pred_region
      %s327 = ssub.s32 %s18, 1
      // Predicated region
      $region13: #{cci_layer_forward.4} parent=11 // pred_check
        %p328 = pneg %p131
      $region14: #{cci_layer_forward.4} parent=11 // pred_check_branch
        %330 = sbr.rel (%p328) target = $region16
      $region15: #{cci_layer_forward.4} parent=11 // pred_region
        _
      $region16: #{cci_layer_forward.4} parent=11 // pred_fallthru
        _
      // Predicated region
      $region17: #{cci_layer_forward.4} parent=11 // pred_check
        %p331 = pneg %p152
      $region18: #{cci_layer_forward.4} parent=11 // pred_check_branch
        %333 = sbr.rel (%p331) target = $region20
      $region19: #{cci_layer_forward.4} parent=11 // pred_region
        _
      $region20: #{cci_layer_forward.4} parent=11 // pred_fallthru
        _
      // Predicated region
      $region21: #{cci_layer_forward.4} parent=11 // pred_check
        %p334 = pneg %p173
      $region22: #{cci_layer_forward.4} parent=11 // pred_check_branch
        %336 = sbr.rel (%p334) target = $region24
      $region23: #{cci_layer_forward.4} parent=11 // pred_region
        _
      $region24: #{cci_layer_forward.4} parent=11 // pred_fallthru
        _
      // Predicated region
      $region25: #{cci_layer_forward.4} parent=11 // pred_check
        %p337 = pneg %p194
      $region26: #{cci_layer_forward.4} parent=11 // pred_check_branch
        %339 = sbr.rel (%p337) target = $region28
      $region27: #{cci_layer_forward.4} parent=11 // pred_region
        _
      $region28: #{cci_layer_forward.4} parent=11 // pred_fallthru
        _
      // Predicated region
      $region29: #{cci_layer_forward.4} parent=11 // pred_check
        %p340 = pneg %p215
      $region30: #{cci_layer_forward.4} parent=11 // pred_check_branch
        %342 = sbr.rel (%p340) target = $region32
      $region31: #{cci_layer_forward.4} parent=11 // pred_region
        _
      $region32: #{cci_layer_forward.4} parent=11 // pred_fallthru
        _
      // Predicated region
      $region33: #{cci_layer_forward.4} parent=11 // pred_check
        %p343 = pneg %p236
      $region34: #{cci_layer_forward.4} parent=11 // pred_check_branch
        %345 = sbr.rel (%p343) target = $region36
      $region35: #{cci_layer_forward.4} parent=11 // pred_region
        _
      $region36: #{cci_layer_forward.4} parent=11 // pred_fallthru
        _
      // Predicated region
      $region37: #{cci_layer_forward.4} parent=11 // pred_check
        %p346 = pneg %p257
      $region38: #{cci_layer_forward.4} parent=11 // pred_check_branch
        %348 = sbr.rel (%p346) target = $region40
      $region39: #{cci_layer_forward.4} parent=11 // pred_region
        _
      $region40: #{cci_layer_forward.4} parent=11 // pred_fallthru
        _
    $region12: #{cci_layer_forward.4} parent=5 // pred_fallthru
      _
    %p349 = scmp.lt.s32.totalorder %s18, 2
    // Predicated region
    $region41: #{cci_layer_forward.4} parent=5 // pred_check
      %p350 = pneg %p349
    $region42: #{cci_layer_forward.4} parent=5 // pred_check_branch
      %352 = sbr.rel (%p350) target = $region44
    $region43: #{cci_layer_forward.4} parent=5 // pred_region
      // Predicated region
      $region45: #{cci_layer_forward.4} parent=43 // pred_check
        %p353 = pneg %p52
      $region46: #{cci_layer_forward.4} parent=43 // pred_check_branch
        %355 = sbr.rel (%p353) target = $region48
      $region47: #{cci_layer_forward.4} parent=43 // pred_region
        %p356 = scmp.lt.s32.totalorder %s25, 1
        %s357 = scalar_select %p356, %s25, 1
        %p358 = scmp.lt.s32.totalorder %s26, 0
        %s359 = scalar_select %p358, %s26, 0
        %s360 = sadd.s32 %s359, %s357
        %s361 = smul.addr %s360, 4
        %s362 = scalar_lea.vmem %s0, %s361
      $region48: #{cci_layer_forward.4} parent=43 // pred_fallthru
        _
      // Predicated region
      $region49: #{cci_layer_forward.4} parent=43 // pred_check
        %p363 = pneg %p78
      $region50: #{cci_layer_forward.4} parent=43 // pred_check_branch
        %365 = sbr.rel (%p363) target = $region52
      $region51: #{cci_layer_forward.4} parent=43 // pred_region
        %p366 = scmp.lt.s32.totalorder %s25, 1
        %s367 = scalar_select %p366, %s25, 1
        %s368 = smul.addr %s367, 4
        %s369 = scalar_lea.vmem %s1, %s368
      $region52: #{cci_layer_forward.4} parent=43 // pred_fallthru
        _
      // Predicated region
      $region53: #{cci_layer_forward.4} parent=43 // pred_check
        %p370 = pneg %p104
      $region54: #{cci_layer_forward.4} parent=43 // pred_check_branch
        %372 = sbr.rel (%p370) target = $region56
      $region55: #{cci_layer_forward.4} parent=43 // pred_region
        %p373 = scmp.lt.s32.totalorder %s25, 1
        %s374 = scalar_select %p373, %s25, 1
        %s375 = smul.addr %s374, 4
        %s376 = smul.addr %s375, 4
        %s377 = scalar_lea.vmem %s2, %s376
      $region56: #{cci_layer_forward.4} parent=43 // pred_fallthru
        _
    $region44: #{cci_layer_forward.4} parent=5 // pred_fallthru
      _
    %p378 = scmp.le.s32.totalorder 1, %s18
    %p379 = scmp.lt.s32.totalorder %s18, 3
    %p380 = pnand %p378, %p379
    %p381 = pneg %p380
    // Predicated region
    $region57: #{cci_layer_forward.4} parent=5 // pred_check
      _
    $region58: #{cci_layer_forward.4} parent=5 // pred_check_branch
      %383 = sbr.rel (%p380) target = $region60
    $region59: #{cci_layer_forward.4} parent=5 // pred_region
      %s384 = ssub.s32 %s18, 1
      %p385 = scmp.lt.s32.totalorder %s27, 1
      %s386 = scalar_select %p385, %s27, 1
      %p387 = scmp.lt.s32.totalorder %s28, 0
      %s388 = scalar_select %p387, %s28, 0
      %s389 = sadd.s32 %s388, %s386
      %s390 = smul.addr %s389, 4
      %s391 = scalar_lea.vmem %s0, %s390
      %p392 = pneg %p58
      %p393 = pneg %p55
      %p394 = scmp.lt.s32.totalorder %s27, 1
      %s395 = scalar_select %p394, %s27, 1
      %s396 = smul.addr %s395, 4
      %s397 = scalar_lea.vmem %s1, %s396
      %p398 = pneg %p84
      %p399 = pneg %p81
      %p400 = scmp.lt.s32.totalorder %s27, 1
      %s401 = scalar_select %p400, %s27, 1
      %s402 = smul.addr %s401, 4
      %s403 = smul.addr %s402, 4
      %s404 = scalar_lea.vmem %s2, %s403
      %p405 = pneg %p110
      %p406 = pneg %p107
      %p407 = pneg %p131
      %p408 = pneg %p128
      %p409 = pneg %p152
      %p410 = pneg %p149
      %p411 = pneg %p173
      %p412 = pneg %p170
      %p413 = pneg %p194
      %p414 = pneg %p191
      %p415 = pneg %p215
      %p416 = pneg %p212
      %p417 = pneg %p236
      %p418 = pneg %p233
      %p419 = pneg %p257
      %p420 = pneg %p254
      %p421 = pneg %p285
      %p422 = pneg %p282
      %p423 = scmp.lt.s32.totalorder %s27, 1
      %s424 = scalar_select %p423, %s27, 1
      %p425 = scmp.lt.s32.totalorder %s28, 0
      %s426 = scalar_select %p425, %s28, 0
      %s427 = smul.addr %s424, 4
      %s428 = sadd.s32 %s426, %s427
      %s429 = smul.addr %s428, 4
      %s430 = scalar_lea.vmem %s10, %s429
      %p431 = pneg %p313
      %p432 = pneg %p310
      %p433 = scmp.lt.s32.totalorder %s27, 1
      %s434 = scalar_select %p433, %s27, 1
      %p435 = scmp.lt.s32.totalorder %s28, 0
      %s436 = scalar_select %p435, %s28, 0
      %s437 = smul.addr %s436, 4
      %s438 = smul.addr %s434, 4
      %s439 = sadd.s32 %s437, %s438
      %s440 = smul.addr %s439, 8
      %s441 = scalar_lea.vmem %s11, %s440
      %p442 = scmp.lt.s32.totalorder %s27, 1
      %s443 = scalar_select %p442, %s27, 1
      %p444 = scmp.lt.s32.totalorder %s28, 0
      %s445 = scalar_select %p444, %s28, 0
      %s446 = sadd.s32 %s445, %s443
      %s447 = smul.addr %s446, 4
      %s448 = scalar_lea.vmem %s0, %s447
      %p449 = scmp.lt.s32.totalorder %s27, 1
      %s450 = scalar_select %p449, %s27, 1
      %s451 = smul.addr %s450, 4
      %s452 = scalar_lea.vmem %s1, %s451
      %p453 = scmp.lt.s32.totalorder %s27, 1
      %s454 = scalar_select %p453, %s27, 1
      %s455 = smul.addr %s454, 4
      %s456 = smul.addr %s455, 4
      %s457 = scalar_lea.vmem %s2, %s456
      %p458 = scmp.lt.s32.totalorder %s27, 1
      %s459 = scalar_select %p458, %s27, 1
      %p460 = scmp.lt.s32.totalorder %s28, 0
      %s461 = scalar_select %p460, %s28, 0
      %s462 = smul.addr %s459, 4
      %s463 = sadd.s32 %s461, %s462
      %s464 = smul.addr %s463, 4
      %s465 = scalar_lea.vmem %s10, %s464
      %p466 = scmp.lt.s32.totalorder %s27, 1
      %s467 = scalar_select %p466, %s27, 1
      %p468 = scmp.lt.s32.totalorder %s28, 0
      %s469 = scalar_select %p468, %s28, 0
      %s470 = smul.addr %s469, 4
      %s471 = smul.addr %s467, 4
      %s472 = sadd.s32 %s470, %s471
      %s473 = smul.addr %s472, 8
      %s474 = scalar_lea.vmem %s11, %s473
      %v476 = vld [vmem:[%s448] sm:$0xf]
      %v477 = vunpack.c.l.bf16 %v476
      %v478 = vld [vmem:[%s3] sm:$0xff]
      %480 = vset.pattern.permute.xlu0 0
      %481 = vperm.xlu0 %480, %v478
      %v482 = vpop.permute.xlu0 %481
      %v484 = vmul.f32 %v477, %v482
      %v485 = vld [vmem:[%s4] sm:$0xff]
      %487 = vset.pattern.permute.xlu0 0
      %488 = vperm.xlu0 %487, %v485
      %v489 = vpop.permute.xlu0 %488
      %v491 = vadd.f32 %v484, %v489
      %v492 = vmax.f32 %v491, 0.0
      %v493 = vpack.c.bf16 %v492, %v492
      %v494 = vld [vmem:[%s452] sm:$0xf]
      %v495 = vunpack.c.l.bf16 %v494
      %v496 = vld [vmem:[%s5] sm:$0xff]
      %498 = vset.pattern.permute.xlu0 0
      %499 = vperm.xlu0 %498, %v496
      %v500 = vpop.permute.xlu0 %499
      %v502 = vmul.f32 %v495, %v500
      %v503 = vld [vmem:[%s6] sm:$0xff]
      %505 = vset.pattern.permute.xlu0 0
      %506 = vperm.xlu0 %505, %v503
      %v507 = vpop.permute.xlu0 %506
      %v509 = vadd.f32 %v502, %v507
      %v510 = vmax.f32 %v509, 0.0
      %v511 = vpack.c.bf16 %v510, %v510
      %v512 = vld [vmem:[%s457] sm:$0xf]
      %v513 = vld [vmem:[%s457 + $0x4] sm:$0xf]
      %v514 = vld [vmem:[%s457 + $0x8] sm:$0xf]
      %v515 = vld [vmem:[%s457 + $0xc] sm:$0xf]
      %v516 = vunpack.c.l.bf16 %v512
      %v517 = vunpack.c.l.bf16 %v513
      %v518 = vunpack.c.l.bf16 %v514
      %v519 = vunpack.c.l.bf16 %v515
      %v520 = vld [vmem:[%s7] sm:$0xff]
      %v521 = vld [vmem:[%s7 + $0x8] sm:$0xff]
      %v522 = vld [vmem:[%s7 + $0x10] sm:$0xff]
      %v523 = vld [vmem:[%s7 + $0x18] sm:$0xff]
      %525 = vset.pattern.permute.xlu0 0
      %526 = vperm.xlu0 %525, %v520
      %v527 = vpop.permute.xlu0 %526
      %530 = vset.pattern.permute.xlu0 0
      %531 = vperm.xlu0 %530, %v521
      %v532 = vpop.permute.xlu0 %531
      %535 = vset.pattern.permute.xlu0 0
      %536 = vperm.xlu0 %535, %v522
      %v537 = vpop.permute.xlu0 %536
      %540 = vset.pattern.permute.xlu0 0
      %541 = vperm.xlu0 %540, %v523
      %v542 = vpop.permute.xlu0 %541
      %v544 = vmul.f32 %v516, %v527
      %v545 = vmul.f32 %v517, %v532
      %v546 = vmul.f32 %v518, %v537
      %v547 = vmul.f32 %v519, %v542
      %v548 = vld [vmem:[%s8] sm:$0xff]
      %v549 = vld [vmem:[%s8 + $0x8] sm:$0xff]
      %v550 = vld [vmem:[%s8 + $0x10] sm:$0xff]
      %v551 = vld [vmem:[%s8 + $0x18] sm:$0xff]
      %553 = vset.pattern.permute.xlu0 0
      %554 = vperm.xlu0 %553, %v548
      %v555 = vpop.permute.xlu0 %554
      %558 = vset.pattern.permute.xlu0 0
      %559 = vperm.xlu0 %558, %v549
      %v560 = vpop.permute.xlu0 %559
      %563 = vset.pattern.permute.xlu0 0
      %564 = vperm.xlu0 %563, %v550
      %v565 = vpop.permute.xlu0 %564
      %568 = vset.pattern.permute.xlu0 0
      %569 = vperm.xlu0 %568, %v551
      %v570 = vpop.permute.xlu0 %569
      %v572 = vadd.f32 %v544, %v555
      %v573 = vadd.f32 %v545, %v560
      %v574 = vadd.f32 %v546, %v565
      %v575 = vadd.f32 %v547, %v570
      %v576 = vmax.f32 %v572, 0.0
      %v577 = vmax.f32 %v573, 0.0
      %v578 = vmax.f32 %v574, 0.0
      %v579 = vmax.f32 %v575, 0.0
      %v580 = vpack.c.bf16 %v577, %v576
      %v581 = vpack.c.bf16 %v579, %v578
      %582 = vxpose.xlu0.c.b16.start [1/8] %v511, 128
      %583 = vxpose.xlu0.c.b16.cont [2/8] 0, 128
      %584 = vxpose.xlu0.c.b16.cont [3/8] 0, 128
      %585 = vxpose.xlu0.c.b16.cont [4/8] 0, 128
      %586 = vxpose.xlu0.c.b16.cont [5/8] 0, 128
      %587 = vxpose.xlu0.c.b16.cont [6/8] 0, 128
      %588 = vxpose.xlu0.c.b16.cont [7/8] 0, 128
      %589 = vxpose.xlu0.c.b16.end [8/8] 0, 128
      %v590 = vpop.trf.xlu0
      %v591 = vpop.trf.xlu0
      %v592 = vpop.trf.xlu0
      %v593 = vpop.trf.xlu0
      %v594 = vpop.trf.xlu0
      %v595 = vpop.trf.xlu0
      %v596 = vpop.trf.xlu0
      %v597 = vpop.trf.xlu0
      %vm598 = vcmask 64512
      %v600 = vsel %vm598, %v590, 0
      %v603 = vsel %vm598, %v591, 0
      %v606 = vsel %vm598, %v592, 0
      %v609 = vsel %vm598, %v593, 0
      %v612 = vsel %vm598, %v594, 0
      %v615 = vsel %vm598, %v595, 0
      %v618 = vsel %vm598, %v596, 0
      %v621 = vsel %vm598, %v597, 0
      %vm623 = vcmask 1043456
      %v625 = vsel %vm623, %v493, 0
      %627 = vmatprep.subr.bf16.mxu0 0
      %628 = vmatpush1.bf16.msra.mxu0 0
      %629 = vmatprep.subr.bf16.mxu0 0
      %630 = vmatpush1.bf16.msra.mxu0 0
      %631 = vmatprep.subr.bf16.mxu0 0
      %632 = vmatpush1.bf16.msra.mxu0 0
      %633 = vmatprep.subr.bf16.mxu0 0
      %634 = vmatpush1.bf16.msra.mxu0 0
      %635 = vmatprep.subr.bf16.mxu0 0
      %636 = vmatpush1.bf16.msra.mxu0 0
      %637 = vmatprep.subr.bf16.mxu0 0
      %638 = vmatpush1.bf16.msra.mxu0 0
      %639 = vmatprep.subr.bf16.mxu0 0
      %640 = vmatpush1.bf16.msra.mxu0 0
      %641 = vmatprep.subr.bf16.mxu0 0
      %642 = vmatpush1.bf16.msra.mxu0 %v625
      %643 = vmatprep.subr.bf16.mxu0 0
      %644 = vmatpush2.bf16.msra.mxu0 0
      %645 = vmatprep.subr.bf16.mxu0 0
      %646 = vmatpush2.bf16.msra.mxu0 0
      %647 = vmatprep.subr.bf16.mxu0 0
      %648 = vmatpush2.bf16.msra.mxu0 0
      %649 = vmatprep.subr.bf16.mxu0 0
      %650 = vmatpush2.bf16.msra.mxu0 0
      %651 = vmatprep.subr.bf16.mxu0 0
      %652 = vmatpush2.bf16.msra.mxu0 0
      %653 = vmatprep.subr.bf16.mxu0 0
      %654 = vmatpush2.bf16.msra.mxu0 0
      %655 = vmatprep.subr.bf16.mxu0 0
      %656 = vmatpush2.bf16.msra.mxu0 0
      %657 = vmatprep.subr.bf16.mxu0 0
      %658 = vmatpush2.bf16.msra.mxu0 0
      %659 = vmatprep.mubr.bf16.mxu0 0
      %660 = vmatmul.mubr.bf16.gmra.mxu0 %v600
      %v661 = vpop.f32.mrf.mxu0
      %v662 = vadd.f32 0.0, %v661
      %v663 = vpop.f32.mrf.mxu0
      %v664 = vpop.f32.mrf.mxu0
      %v665 = vadd.f32 0.0, %v664
      %v666 = vpop.f32.mrf.mxu0
      %667 = vmatprep.mubr.bf16.mxu0 0
      %668 = vmatmul.mubr.bf16.gmra.mxu0 %v603
      %v669 = vpop.f32.mrf.mxu0
      %v670 = vadd.f32 0.0, %v669
      %v671 = vpop.f32.mrf.mxu0
      %v672 = vpop.f32.mrf.mxu0
      %v673 = vadd.f32 0.0, %v672
      %v674 = vpop.f32.mrf.mxu0
      %675 = vmatprep.mubr.bf16.mxu0 0
      %676 = vmatmul.mubr.bf16.gmra.mxu0 %v606
      %v677 = vpop.f32.mrf.mxu0
      %v678 = vadd.f32 0.0, %v677
      %v679 = vpop.f32.mrf.mxu0
      %v680 = vpop.f32.mrf.mxu0
      %v681 = vadd.f32 0.0, %v680
      %v682 = vpop.f32.mrf.mxu0
      %683 = vmatprep.mubr.bf16.mxu0 0
      %684 = vmatmul.mubr.bf16.gmra.mxu0 %v609
      %v685 = vpop.f32.mrf.mxu0
      %v686 = vadd.f32 0.0, %v685
      %v687 = vpop.f32.mrf.mxu0
      %v688 = vpop.f32.mrf.mxu0
      %v689 = vadd.f32 0.0, %v688
      %v690 = vpop.f32.mrf.mxu0
      %691 = vmatprep.mubr.bf16.mxu0 0
      %692 = vmatmul.mubr.bf16.gmra.mxu0 %v612
      %v693 = vpop.f32.mrf.mxu0
      %v694 = vadd.f32 0.0, %v693
      %v695 = vpop.f32.mrf.mxu0
      %v696 = vpop.f32.mrf.mxu0
      %v697 = vadd.f32 0.0, %v696
      %v698 = vpop.f32.mrf.mxu0
      %699 = vmatprep.mubr.bf16.mxu0 0
      %700 = vmatmul.mubr.bf16.gmra.mxu0 %v615
      %v701 = vpop.f32.mrf.mxu0
      %v702 = vadd.f32 0.0, %v701
      %v703 = vpop.f32.mrf.mxu0
      %v704 = vpop.f32.mrf.mxu0
      %v705 = vadd.f32 0.0, %v704
      %v706 = vpop.f32.mrf.mxu0
      %707 = vmatprep.mubr.bf16.mxu0 0
      %708 = vmatmul.mubr.bf16.gmra.mxu0 %v618
      %v709 = vpop.f32.mrf.mxu0
      %v710 = vadd.f32 0.0, %v709
      %v711 = vpop.f32.mrf.mxu0
      %v712 = vpop.f32.mrf.mxu0
      %v713 = vadd.f32 0.0, %v712
      %v714 = vpop.f32.mrf.mxu0
      %715 = vmatprep.mubr.bf16.mxu0 0
      %716 = vmatmul.mubr.bf16.gmra.mxu0 %v621
      %v717 = vpop.f32.mrf.mxu0
      %v718 = vadd.f32 0.0, %v717
      %v719 = vpop.f32.mrf.mxu0
      %v720 = vpop.f32.mrf.mxu0
      %v721 = vadd.f32 0.0, %v720
      %v722 = vpop.f32.mrf.mxu0
      %723 = vdwg.mxu0
      %v724 = vmax.f32 %v662, %v678
      %v725 = vmax.f32 %v665, %v681
      %v726 = vmax.f32 %v670, %v686
      %v727 = vmax.f32 %v673, %v689
      %v728 = vmax.f32 %v724, %v694
      %v729 = vmax.f32 %v725, %v697
      %v730 = vmax.f32 %v726, %v702
      %v731 = vmax.f32 %v727, %v705
      %v732 = vmax.f32 %v728, %v710
      %v733 = vmax.f32 %v729, %v713
      %v734 = vmax.f32 %v730, %v718
      %v735 = vmax.f32 %v731, %v721
      %v736 = vmax.f32 %v732, %v733
      %v737 = vmax.f32 %v734, %v735
      %v738 = vmax.f32 %v736, %v737
      %v739 = vrot.slane %v738, 4
      %v740 = vmax.f32 %v738, %v739
      %v741 = vrot.slane %v740, 2
      %v742 = vmax.f32 %v740, %v741
      %v743 = vrot.slane %v742, 1
      %v744 = vmax.f32 %v742, %v743
      %v745 = vsub.f32 %v662, %v744
      %v746 = vsub.f32 %v665, %v744
      %v747 = vsub.f32 %v670, %v744
      %v748 = vsub.f32 %v673, %v744
      %v749 = vsub.f32 %v678, %v744
      %v750 = vsub.f32 %v681, %v744
      %v751 = vsub.f32 %v686, %v744
      %v752 = vsub.f32 %v689, %v744
      %v753 = vsub.f32 %v694, %v744
      %v754 = vsub.f32 %v697, %v744
      %v755 = vsub.f32 %v702, %v744
      %v756 = vsub.f32 %v705, %v744
      %v757 = vsub.f32 %v710, %v744
      %v758 = vsub.f32 %v713, %v744
      %v759 = vsub.f32 %v718, %v744
      %v760 = vsub.f32 %v721, %v744
      %v761 = vmul.f32 %v745, 1.442695
      %v762 = vpow.pop %v761
      %v763 = vmul.f32 %v746, 1.442695
      %v764 = vpow.pop %v763
      %v765 = vmul.f32 %v747, 1.442695
      %v766 = vpow.pop %v765
      %v767 = vmul.f32 %v748, 1.442695
      %v768 = vpow.pop %v767
      %v769 = vmul.f32 %v749, 1.442695
      %v770 = vpow.pop %v769
      %v771 = vmul.f32 %v750, 1.442695
      %v772 = vpow.pop %v771
      %v773 = vmul.f32 %v751, 1.442695
      %v774 = vpow.pop %v773
      %v775 = vmul.f32 %v752, 1.442695
      %v776 = vpow.pop %v775
      %v777 = vmul.f32 %v753, 1.442695
      %v778 = vpow.pop %v777
      %v779 = vmul.f32 %v754, 1.442695
      %v780 = vpow.pop %v779
      %v781 = vmul.f32 %v755, 1.442695
      %v782 = vpow.pop %v781
      %v783 = vmul.f32 %v756, 1.442695
      %v784 = vpow.pop %v783
      %v785 = vmul.f32 %v757, 1.442695
      %v786 = vpow.pop %v785
      %v787 = vmul.f32 %v758, 1.442695
      %v788 = vpow.pop %v787
      %v789 = vmul.f32 %v759, 1.442695
      %v790 = vpow.pop %v789
      %v791 = vmul.f32 %v760, 1.442695
      %v792 = vpow.pop %v791
      %v793 = vadd.f32 %v762, %v764
      %v794 = vadd.f32 %v793, %v766
      %v795 = vadd.f32 %v794, %v768
      %v796 = vadd.f32 %v795, %v770
      %v797 = vadd.f32 %v796, %v772
      %v798 = vadd.f32 %v797, %v774
      %v799 = vadd.f32 %v798, %v776
      %v800 = vadd.f32 %v799, %v778
      %v801 = vadd.f32 %v800, %v780
      %v802 = vadd.f32 %v801, %v782
      %v803 = vadd.f32 %v802, %v784
      %v804 = vadd.f32 %v803, %v786
      %v805 = vadd.f32 %v804, %v788
      %v806 = vadd.f32 %v805, %v790
      %v807 = vadd.f32 %v806, %v792
      %v808 = vrot.slane %v807, 4
      %v809 = vadd.f32 %v807, %v808
      %v810 = vrot.slane %v809, 2
      %v811 = vadd.f32 %v809, %v810
      %v812 = vrot.slane %v811, 1
      %v813 = vadd.f32 %v811, %v812
      %v814 = vpack.c.bf16 %v764, %v762
      %v815 = vpack.c.bf16 %v768, %v766
      %v816 = vpack.c.bf16 %v772, %v770
      %v817 = vpack.c.bf16 %v776, %v774
      %v818 = vpack.c.bf16 %v780, %v778
      %v819 = vpack.c.bf16 %v784, %v782
      %v820 = vpack.c.bf16 %v788, %v786
      %v821 = vpack.c.bf16 %v792, %v790
      %822 = vmatprep.subr.bf16.mxu0 0
      %823 = vmatpush1.bf16.msra.mxu0 %v821
      %824 = vmatprep.subr.bf16.mxu0 0
      %825 = vmatpush1.bf16.msra.mxu0 %v820
      %826 = vmatprep.subr.bf16.mxu0 0
      %827 = vmatpush1.bf16.msra.mxu0 %v819
      %828 = vmatprep.subr.bf16.mxu0 0
      %829 = vmatpush1.bf16.msra.mxu0 %v818
      %830 = vmatprep.subr.bf16.mxu0 0
      %831 = vmatpush1.bf16.msra.mxu0 %v817
      %832 = vmatprep.subr.bf16.mxu0 0
      %833 = vmatpush1.bf16.msra.mxu0 %v816
      %834 = vmatprep.subr.bf16.mxu0 0
      %835 = vmatpush1.bf16.msra.mxu0 %v815
      %836 = vmatprep.subr.bf16.mxu0 0
      %837 = vmatpush1.bf16.msra.mxu0 %v814
      %838 = vmatprep.subr.bf16.mxu0 0
      %839 = vmatpush2.bf16.msra.mxu0 0
      %840 = vmatprep.subr.bf16.mxu0 0
      %841 = vmatpush2.bf16.msra.mxu0 0
      %842 = vmatprep.subr.bf16.mxu0 0
      %843 = vmatpush2.bf16.msra.mxu0 0
      %844 = vmatprep.subr.bf16.mxu0 0
      %845 = vmatpush2.bf16.msra.mxu0 0
      %846 = vmatprep.subr.bf16.mxu0 0
      %847 = vmatpush2.bf16.msra.mxu0 0
      %848 = vmatprep.subr.bf16.mxu0 0
      %849 = vmatpush2.bf16.msra.mxu0 0
      %850 = vmatprep.subr.bf16.mxu0 0
      %851 = vmatpush2.bf16.msra.mxu0 0
      %852 = vmatprep.subr.bf16.mxu0 0
      %853 = vmatpush2.bf16.msra.mxu0 0
      %854 = vmatprep.mubr.bf16.mxu0 0
      %855 = vmatmul.mubr.bf16.gmra.mxu0 %v580
      %v856 = vpop.f32.mrf.mxu0
      %v857 = vadd.f32 0.0, %v856
      %v858 = vpop.f32.mrf.mxu0
      %v859 = vpop.f32.mrf.mxu0
      %v860 = vadd.f32 0.0, %v859
      %v861 = vpop.f32.mrf.mxu0
      %862 = vmatprep.mubr.bf16.mxu0 0
      %863 = vmatmul.mubr.bf16.gmra.mxu0 %v581
      %v864 = vpop.f32.mrf.mxu0
      %v865 = vadd.f32 0.0, %v864
      %v866 = vpop.f32.mrf.mxu0
      %v867 = vpop.f32.mrf.mxu0
      %v868 = vadd.f32 0.0, %v867
      %v869 = vpop.f32.mrf.mxu0
      %870 = vdwg.mxu0
      %v871 = vrcp.pop %v813
      %v872 = vmul.f32 %v857, %v871
      %v873 = vmul.f32 %v860, %v871
      %v874 = vmul.f32 %v865, %v871
      %v875 = vmul.f32 %v868, %v871
      %v876 = vld [vmem:[%s9] sm:$0xf]
      %v877 = vld [vmem:[%s9 + $0x4] sm:$0xf]
      %v878 = vld [vmem:[%s9 + $0x8] sm:$0xf]
      %v879 = vld [vmem:[%s9 + $0xc] sm:$0xf]
      %v880 = vpack.c.bf16 %v873, %v872
      %v881 = vpack.c.bf16 %v875, %v874
      %v886 = vunpack.c.l.b16 %v876
      %v887 = vunpack.c.l.b16 %v877
      %v888 = vunpack.c.l.b16 %v878
      %v889 = vunpack.c.l.b16 %v879
      %v890 = vpack.c.b16 %v887, %v886
      %v891 = vpack.c.b16 %v889, %v888
      %vm892 = vcmask 261120
      %v894 = vsel %vm892, %v890, 0
      %v897 = vsel %vm892, %v891, 0
      %899 = vmatprep.subr.bf16.mxu0 0
      %900 = vmatpush1.bf16.msra.mxu0 0
      %901 = vmatprep.subr.bf16.mxu0 0
      %902 = vmatpush1.bf16.msra.mxu0 0
      %903 = vmatprep.subr.bf16.mxu0 0
      %904 = vmatpush1.bf16.msra.mxu0 0
      %905 = vmatprep.subr.bf16.mxu0 0
      %906 = vmatpush1.bf16.msra.mxu0 0
      %907 = vmatprep.subr.bf16.mxu0 0
      %908 = vmatpush1.bf16.msra.mxu0 0
      %909 = vmatprep.subr.bf16.mxu0 0
      %910 = vmatpush1.bf16.msra.mxu0 0
      %911 = vmatprep.subr.bf16.mxu0 0
      %912 = vmatpush1.bf16.msra.mxu0 %v881
      %913 = vmatprep.subr.bf16.mxu0 0
      %914 = vmatpush1.bf16.msra.mxu0 %v880
      %915 = vmatprep.subr.bf16.mxu0 0
      %916 = vmatpush2.bf16.msra.mxu0 0
      %917 = vmatprep.subr.bf16.mxu0 0
      %918 = vmatpush2.bf16.msra.mxu0 0
      %919 = vmatprep.subr.bf16.mxu0 0
      %920 = vmatpush2.bf16.msra.mxu0 0
      %921 = vmatprep.subr.bf16.mxu0 0
      %922 = vmatpush2.bf16.msra.mxu0 0
      %923 = vmatprep.subr.bf16.mxu0 0
      %924 = vmatpush2.bf16.msra.mxu0 0
      %925 = vmatprep.subr.bf16.mxu0 0
      %926 = vmatpush2.bf16.msra.mxu0 0
      %927 = vmatprep.subr.bf16.mxu0 0
      %928 = vmatpush2.bf16.msra.mxu0 0
      %929 = vmatprep.subr.bf16.mxu0 0
      %930 = vmatpush2.bf16.msra.mxu0 0
      %931 = vmatprep.mubr.bf16.mxu0 0
      %932 = vmatmul.mubr.bf16.gmra.mxu0 %v894
      %v933 = vpop.f32.mrf.mxu0
      %v934 = vadd.f32 0.0, %v933
      %v935 = vpop.f32.mrf.mxu0
      %v936 = vpop.f32.mrf.mxu0
      %v937 = vadd.f32 0.0, %v936
      %v938 = vpop.f32.mrf.mxu0
      %939 = vmatprep.mubr.bf16.mxu0 0
      %940 = vmatmul.mubr.bf16.gmra.mxu0 %v897
      %v941 = vpop.f32.mrf.mxu0
      %v942 = vadd.f32 0.0, %v941
      %v943 = vpop.f32.mrf.mxu0
      %v944 = vpop.f32.mrf.mxu0
      %v945 = vadd.f32 0.0, %v944
      %v946 = vpop.f32.mrf.mxu0
      %947 = vdwg.mxu0
      %v948 = vpack.c.bf16 %v937, %v934
      %v949 = vpack.c.bf16 %v945, %v942
      %v952 = vunpack.c.l.b16 %v948
      %v953 = vunpack.c.h.b16 %v948
      %v954 = vunpack.c.l.b16 %v949
      %v955 = vunpack.c.h.b16 %v949
      %v956 = vpack.c.b16 %v952, %v952
      %v957 = vpack.c.b16 %v953, %v953
      %v958 = vpack.c.b16 %v954, %v954
      %v959 = vpack.c.b16 %v955, %v955
      %964 = vst [vmem:[%s465] sm:$0xf] %v956
      %965 = vst [vmem:[%s465 + $0x4] sm:$0xf] %v957
      %966 = vst [vmem:[%s465 + $0x8] sm:$0xf] %v958
      %967 = vst [vmem:[%s465 + $0xc] sm:$0xf] %v959
      %968 = vadd.xlane.f32.xlu0 %v934
      %v969 = vpop.xlane.xlu0 %968
      %970 = vadd.xlane.f32.xlu0 %v937
      %v971 = vpop.xlane.xlu0 %970
      %972 = vadd.xlane.f32.xlu0 %v942
      %v973 = vpop.xlane.xlu0 %972
      %974 = vadd.xlane.f32.xlu0 %v945
      %v975 = vpop.xlane.xlu0 %974
      %vm976 = vcmask 7168
      %977 = vst.msk [vmem:[%s474] sm:$0xff] %vm976, %v969
      %978 = vst.msk [vmem:[%s474 + $0x8] sm:$0xff] %vm976, %v971
      %979 = vst.msk [vmem:[%s474 + $0x10] sm:$0xff] %vm976, %v973
      %980 = vst.msk [vmem:[%s474 + $0x18] sm:$0xff] %vm976, %v975
      %v981 = vmul.f32 %v934, %v934
      %v982 = vmul.f32 %v937, %v937
      %v983 = vmul.f32 %v942, %v942
      %v984 = vmul.f32 %v945, %v945
      %985 = vadd.xlane.f32.xlu0 %v981
      %v986 = vpop.xlane.xlu0 %985
      %987 = vadd.xlane.f32.xlu0 %v982
      %v988 = vpop.xlane.xlu0 %987
      %989 = vadd.xlane.f32.xlu0 %v983
      %v990 = vpop.xlane.xlu0 %989
      %991 = vadd.xlane.f32.xlu0 %v984
      %v992 = vpop.xlane.xlu0 %991
      %vm993 = vcmask 15368
      %994 = vst.msk [vmem:[%s474] sm:$0xff] %vm993, %v986
      %995 = vst.msk [vmem:[%s474 + $0x8] sm:$0xff] %vm993, %v988
      %996 = vst.msk [vmem:[%s474 + $0x10] sm:$0xff] %vm993, %v990
      %997 = vst.msk [vmem:[%s474 + $0x18] sm:$0xff] %vm993, %v992
      %p998 = scmp.lt.s32.totalorder %s27, 1
      %s999 = scalar_select %p998, %s27, 1
      %p1000 = scmp.lt.s32.totalorder %s28, 0
      %s1001 = scalar_select %p1000, %s28, 0
      %s1002 = smul.addr %s999, 4
      %s1003 = sadd.s32 %s1001, %s1002
      %s1004 = smul.addr %s1003, 4
      %s1005 = scalar_lea.vmem %s10, %s1004
      %p1006 = scmp.lt.s32.totalorder %s27, 1
      %s1007 = scalar_select %p1006, %s27, 1
      %p1008 = scmp.lt.s32.totalorder %s28, 0
      %s1009 = scalar_select %p1008, %s28, 0
      %s1010 = smul.addr %s1009, 4
      %s1011 = smul.addr %s1007, 4
      %s1012 = sadd.s32 %s1010, %s1011
      %s1013 = smul.addr %s1012, 8
      %s1014 = scalar_lea.vmem %s11, %s1013
      // Predicated region
      $region61: #{cci_layer_forward.4} parent=59 // pred_check
        %p1015 = pneg %p282
      $region62: #{cci_layer_forward.4} parent=59 // pred_check_branch
        %1017 = sbr.rel (%p1015) target = $region64
      $region63: #{cci_layer_forward.4} parent=59 // pred_region
        _
      $region64: #{cci_layer_forward.4} parent=59 // pred_fallthru
        _
      // Predicated region
      $region65: #{cci_layer_forward.4} parent=59 // pred_check
        %p1018 = pneg %p310
      $region66: #{cci_layer_forward.4} parent=59 // pred_check_branch
        %1020 = sbr.rel (%p1018) target = $region68
      $region67: #{cci_layer_forward.4} parent=59 // pred_region
        _
      $region68: #{cci_layer_forward.4} parent=59 // pred_fallthru
        _
    $region60: #{cci_layer_forward.4} parent=5 // pred_fallthru
      _
    %p1021 = scmp.le.s32.totalorder 2, %s18
    // Predicated region
    $region69: #{cci_layer_forward.4} parent=5 // pred_check
      %p1022 = pneg %p1021
    $region70: #{cci_layer_forward.4} parent=5 // pred_check_branch
      %1024 = sbr.rel (%p1022) target = $region72
    $region71: #{cci_layer_forward.4} parent=5 // pred_region
      %s1025 = ssub.s32 %s18, 2
      // Predicated region
      $region73: #{cci_layer_forward.4} parent=71 // pred_check
        %p1026 = pneg %p288
      $region74: #{cci_layer_forward.4} parent=71 // pred_check_branch
        %1028 = sbr.rel (%p1026) target = $region76
      $region75: #{cci_layer_forward.4} parent=71 // pred_region
        %p1029 = scmp.lt.s32.totalorder %s29, 1
        %s1030 = scalar_select %p1029, %s29, 1
        %p1031 = scmp.lt.s32.totalorder %s30, 0
        %s1032 = scalar_select %p1031, %s30, 0
        %s1033 = smul.addr %s1030, 4
        %s1034 = sadd.s32 %s1032, %s1033
        %s1035 = smul.addr %s1034, 4
        %s1036 = scalar_lea.vmem %s10, %s1035
      $region76: #{cci_layer_forward.4} parent=71 // pred_fallthru
        _
      // Predicated region
      $region77: #{cci_layer_forward.4} parent=71 // pred_check
        %p1037 = pneg %p316
      $region78: #{cci_layer_forward.4} parent=71 // pred_check_branch
        %1039 = sbr.rel (%p1037) target = $region80
      $region79: #{cci_layer_forward.4} parent=71 // pred_region
        %p1040 = scmp.lt.s32.totalorder %s29, 1
        %s1041 = scalar_select %p1040, %s29, 1
        %p1042 = scmp.lt.s32.totalorder %s30, 0
        %s1043 = scalar_select %p1042, %s30, 0
        %s1044 = smul.addr %s1043, 4
        %s1045 = smul.addr %s1041, 4
        %s1046 = sadd.s32 %s1044, %s1045
        %s1047 = smul.addr %s1046, 8
        %s1048 = scalar_lea.vmem %s11, %s1047
      $region80: #{cci_layer_forward.4} parent=71 // pred_fallthru
        _
    $region72: #{cci_layer_forward.4} parent=5 // pred_fallthru
      _
  $region6: #{cci_layer_forward.4} parent=0 // loop_footer
    %s22 = sadd.s32 1, %s18
  $region7: #{cci_layer_forward.4} parent=0 // loop_footer_branch
    %17 = sbr.rel target = $region3
  $region8: #{cci_layer_forward.4} parent=0 // loop_exit
    _

</llo_original>
